<compile_context>
chip_gen: v6e
topology: v6e:2x2x1
jax: 0.10.0
libtpu: 0.0.40
codegen_flags: <defaults>
</compile_context>

<pallas_src>
import functools

import jax
import jax.numpy as jnp
from jax import lax
from jax.experimental import pallas as pl
from jax.experimental.pallas import tpu as pltpu


# -------------------- hardware / tiling helpers --------------------

def _vmem_capacity_bytes():
    try:
        return int(pltpu.get_tpu_info().vmem_capacity_bytes)
    except Exception:          # pragma: no cover - conservative fallback (v7x per-core)
        return 64 << 20


def _round_up(x, m):
    return ((x + m - 1) // m) * m


def _pick_batch_split(B):
    """v7x has 2 TensorCores; a leading 'parallel' batch axis gives ~2x on the serial
    recurrence there.  Harmless (a couple extra grid steps) on single-TC v5e/v6e.  Only
    split when each half remains a sublane-legal (multiple-of-8) block."""
    if B % 2 == 0 and (B // 2) % 8 == 0:
        return 2
    return 1


def _pick_t_tile(T, budget_bytes, per_t_bytes, fixed_bytes):
    """Largest divisor of T that is a legal block dim (multiple of 8, or the full extent)
    and keeps the Stage-1 streamed working set under the VMEM budget."""
    budget_t = max(1, (budget_bytes - fixed_bytes) // max(per_t_bytes, 1))
    legal = [d for d in range(1, T + 1) if T % d == 0 and (d % 8 == 0 or d == T)]
    fitting = [d for d in legal if d <= budget_t]
    return max(fitting) if fitting else min(legal)


# -------------------- Stage 1: LSTM recurrence kernel --------------------

def _lstm_recurrence_kernel(pg_ref,     # (t_tile, Bb, 4H) bf16  pre-gates x@W_ih^T + b
                            h0_ref,     # (Bb, H) f32
                            c0_ref,     # (Bb, H) f32
                            whh_hbm,    # (H, 4H) bf16, memory_space=ANY (stays in HBM)
                            h_out_ref,  # (Bb, t_tile, H) bf16  batch-first hidden output
                            whh_sc,     # (H, 4H) bf16 VMEM scratch (single-buffered weight)
                            h_sc,       # (Bb, H) f32  carried hidden state
                            c_sc,       # (Bb, H) f32  carried cell state
                            *, hidden, t_tile):
    H = hidden

    # First time-tile of this batch block: load initial state, stage the recurrent
    # weight once (single VMEM buffer instead of a double-buffered BlockSpec).
    @pl.when(pl.program_id(1) == 0)
    def _():
        pltpu.sync_copy(whh_hbm, whh_sc)
        h_sc[...] = h0_ref[...]
        c_sc[...] = c0_ref[...]

    def step(t, carry):
        h_prev = h_sc[...]
        c_prev = c_sc[...]
        # Only the unavoidable recurrent matmul stays on the sequential critical path.
        # State is carried in f32; only the matmul operand is rounded to bf16.
        # TODO(synk): hold W_hh^T in the MXU weight registers across the unrolled steps
        # (pltpu.matmul_push_rhs once per tile + matmul_acc_lhs / matmul_pop per step) to
        # avoid re-pushing the RHS every timestep when B << MXU width.
        rec = jnp.dot(h_prev.astype(jnp.bfloat16), whh_sc[...],
                      preferred_element_type=jnp.float32)
        gates = pg_ref[t].astype(jnp.float32) + rec          # (Bb, 4H), order i, f, g, o
        # NOTE: slices are lane-aligned when H % 128 == 0 (or when the block spans the
        # full feature dim, as in the small demo config).
        i_g = jax.nn.sigmoid(gates[:, 0 * H:1 * H])
        f_g = jax.nn.sigmoid(gates[:, 1 * H:2 * H])
        g_g = jnp.tanh(gates[:, 2 * H:3 * H])
        o_g = jax.nn.sigmoid(gates[:, 3 * H:4 * H])
        c_new = f_g * c_prev + i_g * g_g
        h_new = o_g * jnp.tanh(c_new)
        c_sc[...] = c_new
        h_sc[...] = h_new
        # Write directly in batch-first layout -> no (T,B,H) transpose before Stage 2.
        h_out_ref[:, pl.ds(t, 1), :] = h_new[:, None, :].astype(h_out_ref.dtype)
        return carry

    # Partial unroll: enough for LLO overlap, bounded vreg pressure.
    lax.fori_loop(0, t_tile, step, 0, unroll=min(t_tile, 8))


# -------------------- Stage 2: vocab projection kernel --------------------

def _vocab_proj_kernel(h_ref,   # (tm, H)  bf16
                       w_ref,   # (H, tn)  bf16
                       o_ref):  # (tm, tn) f32
    # f32 accumulation in the MXU; output kept f32 to match the module's Linear output.
    o_ref[...] = jnp.dot(h_ref[...], w_ref[...], preferred_element_type=jnp.float32)


# -------------------- wrapper --------------------

def decoder_forward(params, enc_output_ls, tgt):
    """params: dict of arrays; enc_output_ls: (h0, c0) each (L=1, B, H); tgt: (B, T) int32."""
    h0, c0 = enc_output_ls
    B, T = tgt.shape
    E = params["embedding"].shape[1]
    H = params["w_hh_t"].shape[0]
    V = params["w_proj_t"].shape[1]
    cap = _vmem_capacity_bytes()

    # ---- Stage 0 (glue): embedding gather + one batched input projection, bf16 ----
    # Time-major (T, B, 4H) so Stage 1 reads a contiguous (B, 4H) slab per step; the
    # transposed index array (T, B) is tiny.  padding_idx=0 handled by the zero row.
    emb = jnp.take(params["embedding"].astype(jnp.bfloat16), tgt.T, axis=0)    # (T,B,E)
    pre = jnp.dot(emb.reshape(T * B, E), params["w_ih_t"].astype(jnp.bfloat16),
                  preferred_element_type=jnp.float32) + params["bias"]
    pre_gates = pre.astype(jnp.bfloat16).reshape(T, B, 4 * H)
    # TODO(synk): fuse this gather into Stage 1 (PrefetchScalarGridSpec + DMA gather) to
    # avoid materializing the (T, B, 4H) pre-gate tensor in HBM at all.

    # ---- Stage 1: sequential LSTM recurrence, streamed over time tiles ----
    nb = _pick_batch_split(B)
    Bb = B // nb
    # VMEM accounting (bytes): double-buffered pre-gate + hidden-output blocks scale
    # with t_tile; weight scratch / state / h0 / c0 are fixed.
    per_t = 2 * Bb * 4 * H * 2 + 2 * Bb * H * 2
    fixed = (H * 4 * H * 2) + (2 * 2 * Bb * H * 4) + (2 * Bb * H * 4)
    t_tile = _pick_t_tile(T, int(cap * 0.45), per_t, fixed)
    s1_bytes = per_t * t_tile + fixed
    s1_limit = int(min(cap * 0.9, max(2 * s1_bytes + (8 << 20), 32 << 20)))

    kernel_a = functools.partial(_lstm_recurrence_kernel, hidden=H, t_tile=t_tile)
    h_all = pl.pallas_call(
        kernel_a,
        out_shape=jax.ShapeDtypeStruct((B, T, H), jnp.bfloat16),      # batch_first
        grid=(nb, T // t_tile),
        in_specs=[
            pl.BlockSpec((t_tile, Bb, 4 * H), lambda b, i: (i, b, 0)),
            pl.BlockSpec((Bb, H), lambda b, i: (b, 0)),
            pl.BlockSpec((Bb, H), lambda b, i: (b, 0)),
            pl.BlockSpec(memory_space=pl.ANY),                        # W_hh^T in HBM
        ],
        out_specs=pl.BlockSpec((Bb, t_tile, H), lambda b, i: (b, i, 0)),
        scratch_shapes=[pltpu.VMEM((H, 4 * H), jnp.bfloat16),         # staged W_hh^T
                        pltpu.VMEM((Bb, H), jnp.float32),             # h carry
                        pltpu.VMEM((Bb, H), jnp.float32)],            # c carry
        compiler_params=pltpu.CompilerParams(
            dimension_semantics=("parallel", "arbitrary"),
            vmem_limit_bytes=s1_limit),
    )(pre_gates,
      h0[0].astype(jnp.float32),
      c0[0].astype(jnp.float32),
      params["w_hh_t"].astype(jnp.bfloat16))

    # ---- Stage 2: vocab projection, weight-stationary tiled matmul ----
    h_btH = h_all.reshape(B * T, H)              # batch-first -> free reshape, no transpose
    M = B * T

    if V % 128 == 0 or V < 128:
        # Either lane-dense already, or a single full-extent lane tile (tiny vocab demo).
        Vp = V
        w_proj = params["w_proj_t"].astype(jnp.bfloat16)
    else:
        # Pad only the weight (small vs the logits); the logits output is written
        # unpadded — the edge column tile's out-of-bounds lanes are masked by Pallas,
        # so no post-kernel [..., :V] slice/copy of the whole logits tensor is needed.
        Vp = _round_up(V, 128)
        w_proj = jnp.pad(params["w_proj_t"].astype(jnp.bfloat16), ((0, 0), (0, Vp - V)))

    tn = Vp if Vp < 128 else next(t for t in (512, 256, 128) if Vp % t == 0)
    # Prefer a fully resident activation block (tm = M): activations, weights and logits
    # then each move through HBM exactly once.
    act_bytes = 2 * M * H * 2                    # double-buffered bf16 activations
    if act_bytes <= int(cap * 0.25):
        tm = M
    else:
        tm = next((t for t in (512, 256, 128) if M % t == 0), M)
    s2_bytes = 2 * (tm * H * 2) + 2 * (H * tn * 2) + 2 * (tm * tn * 4)
    s2_limit = int(min(cap * 0.9, max(2 * s2_bytes + (8 << 20), 32 << 20)))

    logits2d = pl.pallas_call(
        _vocab_proj_kernel,
        out_shape=jax.ShapeDtypeStruct((M, V), jnp.float32),
        grid=(Vp // tn, M // tm),                # V tiles OUTERMOST: each weight tile is
        in_specs=[                               # DMA'd from HBM exactly once.
            pl.BlockSpec((tm, H), lambda j, i: (i, 0)),
            pl.BlockSpec((H, tn), lambda j, i: (0, j)),
        ],
        out_specs=pl.BlockSpec((tm, tn), lambda j, i: (i, j)),
        compiler_params=pltpu.CompilerParams(
            dimension_semantics=("parallel", "parallel"),
            vmem_limit_bytes=s2_limit),
    )(h_btH, w_proj)

    return logits2d.reshape(B, T, V)             # (B, T, V) batch_first


# -------------------- pure-JAX f32 reference (PyTorch semantics) --------------------

def decoder_reference(params, enc_output_ls, tgt):
    h0, c0 = enc_output_ls
    H = params["w_hh_t"].shape[0]
    emb = jnp.take(params["embedding"], tgt, axis=0)              # (B, T, E)
    x_tbe = jnp.transpose(emb, (1, 0, 2))

    def step(carry, x_t):
        h, c = carry
        gates = x_t @ params["w_ih_t"] + h @ params["w_hh_t"] + params["bias"]
        i = jax.nn.sigmoid(gates[:, 0 * H:1 * H])
        f = jax.nn.sigmoid(gates[:, 1 * H:2 * H])
        g = jnp.tanh(gates[:, 2 * H:3 * H])
        o = jax.nn.sigmoid(gates[:, 3 * H:4 * H])
        c_new = f * c + i * g
        h_new = o * jnp.tanh(c_new)
        return (h_new, c_new), h_new

    (_, _), hs = lax.scan(step, (h0[0], c0[0]), x_tbe)            # (T, B, H)
    logits = hs @ params["w_proj_t"]                              # (T, B, V)
    return jnp.transpose(logits, (1, 0, 2))


# -------------------- main --------------------

if __name__ == "__main__":
    # small config consistent with the module
    VOCAB = 32      # config.vocab
    EMB = 16        # config.wordEmbDim
    HID = 32        # config.dHidden
    LAYERS = 1      # config.lstmLayer (see TODO above)
    B, T = 2, 8

    key = jax.random.PRNGKey(0)
    k_emb, k_wih, k_whh, k_bih, k_bhh, k_proj, k_tgt, k_h0, k_c0 = jax.random.split(key, 9)

    # Embedding table with padding_idx=0 row zeroed.
    embedding = 0.1 * jax.random.normal(k_emb, (VOCAB, EMB), dtype=jnp.float32)
    embedding = embedding.at[0].set(0.0)

    # LSTM parameters (PyTorch layout W_ih: (4H, E), W_hh: (4H, H)); store transposed.
    w_ih = 0.1 * jax.random.normal(k_wih, (4 * HID, EMB), dtype=jnp.float32)
    w_hh = 0.1 * jax.random.normal(k_whh, (4 * HID, HID), dtype=jnp.float32)
    b_ih = 0.1 * jax.random.normal(k_bih, (4 * HID,), dtype=jnp.float32)
    b_hh = 0.1 * jax.random.normal(k_bhh, (4 * HID,), dtype=jnp.float32)

    # Projection Linear(H, vocab, bias=False): weight (vocab, H); store transposed.
    w_proj = 0.1 * jax.random.normal(k_proj, (VOCAB, HID), dtype=jnp.float32)

    params = {
        "embedding": embedding,
        "w_ih_t": w_ih.T,                              # (E, 4H)
        "w_hh_t": w_hh.T,                              # (H, 4H)
        "bias": (b_ih + b_hh).reshape(1, 4 * HID),     # (1, 4H)
        "w_proj_t": w_proj.T,                          # (H, V)
    }

    # Inputs: target token ids and encoder-provided (h0, c0).
    tgt = jax.random.randint(k_tgt, (B, T), 0, VOCAB, dtype=jnp.int32)
    h0 = 0.1 * jax.random.normal(k_h0, (LAYERS, B, HID), dtype=jnp.float32)
    c0 = 0.1 * jax.random.normal(k_c0, (LAYERS, B, HID), dtype=jnp.float32)

    logits = decoder_forward(params, (h0, c0), tgt)
    jax.block_until_ready(logits)

    ref = decoder_reference(params, (h0, c0), tgt)
    assert logits.shape == (B, T, VOCAB)
    # Kernel uses bf16 matmul operands / streamed tensors (f32 state & accumulation);
    # compare to the pure-f32 reference with a tolerance that covers bf16 rounding but
    # still catches structural / ordering bugs (those produce O(1)-relative errors).
    assert jnp.allclose(logits, ref, rtol=5e-2, atol=5e-3), "mismatch vs reference"

    print("KERNEL_OK")
</pallas_src>

<mosaic_0001>
module attributes {stable_mosaic.version = 11 : i64} {
  func.func @_lstm_recurrence_kernel(%arg0: i32, %arg1: i32, %arg2: memref<8x2x128xbf16, #tpu.memory_space<vmem>>, %arg3: memref<2x32xf32, #tpu.memory_space<vmem>>, %arg4: memref<2x32xf32, #tpu.memory_space<vmem>>, %arg5: memref<32x128xbf16, #tpu.memory_space<any>>, %arg6: memref<2x8x32xbf16, #tpu.memory_space<vmem>>, %arg7: memref<32x128xbf16, #tpu.memory_space<vmem>>, %arg8: memref<2x32xf32, #tpu.memory_space<vmem>>, %arg9: memref<2x32xf32, #tpu.memory_space<vmem>>) attributes {dimension_semantics = [#tpu.dimension_semantics<parallel>, #tpu.dimension_semantics<arbitrary>], iteration_bounds = array<i64: 1, 1>, scalar_prefetch = 0 : i64, scratch_operands = 3 : i64, tpu.core_type = #tpu.core_type<tc>, window_params = [{transform_indices = @transform_0, window_bounds = array<i64: 8, 2, 128>}, {transform_indices = @transform_1, window_bounds = array<i64: 2, 32>}, {transform_indices = @transform_2, window_bounds = array<i64: 2, 32>}, {}, {transform_indices = @transform_4, window_bounds = array<i64: 2, 8, 32>}]} {
    %c0_i32 = arith.constant 0 : i32
    %0 = arith.cmpi eq, %arg1, %c0_i32 : i32
    %1 = arith.extui %0 : i1 to i32
    %c0_i32_0 = arith.constant 0 : i32
    %2 = arith.cmpi ne, %1, %c0_i32_0 : i32
    scf.if %2 {
      "tpu.region"() ({
        %335 = tpu.sem_alloc : memref<!tpu.dma_semaphore, #tpu.memory_space<semaphore_mem>>
        tpu.enqueue_dma source(%arg5 : memref<32x128xbf16, #tpu.memory_space<any>>) target(%arg7 : memref<32x128xbf16, #tpu.memory_space<vmem>>) target_semaphore(%335 : memref<!tpu.dma_semaphore, #tpu.memory_space<semaphore_mem>>)
        tpu.wait_dma2 semaphore(%335 : memref<!tpu.dma_semaphore, #tpu.memory_space<semaphore_mem>>) src(%arg5 : memref<32x128xbf16, #tpu.memory_space<any>>) dst(%arg7 : memref<32x128xbf16, #tpu.memory_space<vmem>>)
        tpu.yield
      }) : () -> ()
      %c0_144 = arith.constant 0 : index
      %c0_145 = arith.constant 0 : index
      %331 = vector.load %arg3[%c0_144, %c0_145] : memref<2x32xf32, #tpu.memory_space<vmem>>, vector<2x32xf32>
      %c0_146 = arith.constant 0 : index
      %c0_147 = arith.constant 0 : index
      %332 = vector.load %arg8[%c0_146, %c0_147] : memref<2x32xf32, #tpu.memory_space<vmem>>, vector<2x32xf32>
      tpu.vector_store %arg8[%c0_146, %c0_147], %331 {strides = array<i32>} : memref<2x32xf32, #tpu.memory_space<vmem>>, vector<2x32xf32>,
      %c0_148 = arith.constant 0 : index
      %c0_149 = arith.constant 0 : index
      %333 = vector.load %arg4[%c0_148, %c0_149] : memref<2x32xf32, #tpu.memory_space<vmem>>, vector<2x32xf32>
      %c0_150 = arith.constant 0 : index
      %c0_151 = arith.constant 0 : index
      %334 = vector.load %arg9[%c0_150, %c0_151] : memref<2x32xf32, #tpu.memory_space<vmem>>, vector<2x32xf32>
      tpu.vector_store %arg9[%c0_150, %c0_151], %333 {strides = array<i32>} : memref<2x32xf32, #tpu.memory_space<vmem>>, vector<2x32xf32>,
    } else {
    }
    %c0_i32_1 = arith.constant 0 : i32
    %c0 = arith.constant 0 : index
    %c0_2 = arith.constant 0 : index
    %3 = vector.load %arg8[%c0, %c0_2] : memref<2x32xf32, #tpu.memory_space<vmem>>, vector<2x32xf32>
    %c0_3 = arith.constant 0 : index
    %c0_4 = arith.constant 0 : index
    %4 = vector.load %arg9[%c0_3, %c0_4] : memref<2x32xf32, #tpu.memory_space<vmem>>, vector<2x32xf32>
    %5 = arith.truncf %3 : vector<2x32xf32> to vector<2x32xbf16>
    %c0_5 = arith.constant 0 : index
    %c0_6 = arith.constant 0 : index
    %6 = vector.load %arg7[%c0_5, %c0_6] : memref<32x128xbf16, #tpu.memory_space<vmem>>, vector<32x128xbf16>
    %cst = arith.constant dense<0.000000e+00> : vector<2x128xf32>
    %7 = tpu.matmul %5, %6, %cst {dimension_numbers = #tpu.dot_dimension_numbers<[1], [0], [0], [1], [0, 0, 1, 1], [], []>} : vector<2x32xbf16>, vector<32x128xbf16>, vector<2x128xf32> -> vector<2x128xf32>
    %8 = arith.index_cast %c0_i32_1 : i32 to index
    %c0_7 = arith.constant 0 : index
    %c0_8 = arith.constant 0 : index
    %9 = vector.load %arg2[%8, %c0_7, %c0_8] : memref<8x2x128xbf16, #tpu.memory_space<vmem>>, vector<1x2x128xbf16>
    %10 = vector.shape_cast %9 : vector<1x2x128xbf16> to vector<2x128xbf16>
    %11 = arith.extf %10 : vector<2x128xbf16> to vector<2x128xf32>
    %12 = arith.addf %11, %7 : vector<2x128xf32>
    %13 = vector.extract_strided_slice %12 {offsets = [0, 0], sizes = [2, 32], strides = [1, 1]} : vector<2x128xf32> to vector<2x32xf32>
    %14 = arith.negf %13 : vector<2x32xf32>
    %15 = math.exp %14 : vector<2x32xf32>
    %cst_9 = arith.constant 1.000000e+00 : f32
    %16 = vector.broadcast %cst_9 : f32 to vector<2x32xf32>
    %17 = arith.addf %16, %15 : vector<2x32xf32>
    %18 = arith.divf %16, %17 : vector<2x32xf32>
    %19 = vector.extract_strided_slice %12 {offsets = [0, 32], sizes = [2, 32], strides = [1, 1]} : vector<2x128xf32> to vector<2x32xf32>
    %20 = arith.negf %19 : vector<2x32xf32>
    %21 = math.exp %20 : vector<2x32xf32>
    %cst_10 = arith.constant 1.000000e+00 : f32
    %22 = vector.broadcast %cst_10 : f32 to vector<2x32xf32>
    %23 = arith.addf %22, %21 : vector<2x32xf32>
    %24 = arith.divf %22, %23 : vector<2x32xf32>
    %25 = vector.extract_strided_slice %12 {offsets = [0, 64], sizes = [2, 32], strides = [1, 1]} : vector<2x128xf32> to vector<2x32xf32>
    %26 = math.tanh %25 : vector<2x32xf32>
    %27 = vector.extract_strided_slice %12 {offsets = [0, 96], sizes = [2, 32], strides = [1, 1]} : vector<2x128xf32> to vector<2x32xf32>
    %28 = arith.negf %27 : vector<2x32xf32>
    %29 = math.exp %28 : vector<2x32xf32>
    %cst_11 = arith.constant 1.000000e+00 : f32
    %30 = vector.broadcast %cst_11 : f32 to vector<2x32xf32>
    %31 = arith.addf %30, %29 : vector<2x32xf32>
    %32 = arith.divf %30, %31 : vector<2x32xf32>
    %33 = arith.mulf %24, %4 : vector<2x32xf32>
    %34 = arith.mulf %18, %26 : vector<2x32xf32>
    %35 = arith.addf %33, %34 : vector<2x32xf32>
    %36 = math.tanh %35 : vector<2x32xf32>
    %37 = arith.mulf %32, %36 : vector<2x32xf32>
    %c0_12 = arith.constant 0 : index
    %c0_13 = arith.constant 0 : index
    %38 = vector.load %arg9[%c0_12, %c0_13] : memref<2x32xf32, #tpu.memory_space<vmem>>, vector<2x32xf32>
    tpu.vector_store %arg9[%c0_12, %c0_13], %35 {strides = array<i32>} : memref<2x32xf32, #tpu.memory_space<vmem>>, vector<2x32xf32>,
    %c0_14 = arith.constant 0 : index
    %c0_15 = arith.constant 0 : index
    %39 = vector.load %arg8[%c0_14, %c0_15] : memref<2x32xf32, #tpu.memory_space<vmem>>, vector<2x32xf32>
    tpu.vector_store %arg8[%c0_14, %c0_15], %37 {strides = array<i32>} : memref<2x32xf32, #tpu.memory_space<vmem>>, vector<2x32xf32>,
    %40 = vector.shape_cast %37 : vector<2x32xf32> to vector<2x1x32xf32>
    %41 = arith.truncf %40 : vector<2x1x32xf32> to vector<2x1x32xbf16>
    %c0_16 = arith.constant 0 : index
    %42 = arith.index_cast %c0_i32_1 : i32 to index
    %c0_17 = arith.constant 0 : index
    %43 = vector.load %arg6[%c0_16, %42, %c0_17] : memref<2x8x32xbf16, #tpu.memory_space<vmem>>, vector<2x1x32xbf16>
    tpu.vector_store %arg6[%c0_16, %42, %c0_17], %41 {strides = array<i32>} : memref<2x8x32xbf16, #tpu.memory_space<vmem>>, vector<2x1x32xbf16>,
    %c1_i32 = arith.constant 1 : i32
    %c0_18 = arith.constant 0 : index
    %c0_19 = arith.constant 0 : index
    %44 = vector.load %arg8[%c0_18, %c0_19] : memref<2x32xf32, #tpu.memory_space<vmem>>, vector<2x32xf32>
    %c0_20 = arith.constant 0 : index
    %c0_21 = arith.constant 0 : index
    %45 = vector.load %arg9[%c0_20, %c0_21] : memref<2x32xf32, #tpu.memory_space<vmem>>, vector<2x32xf32>
    %46 = arith.truncf %44 : vector<2x32xf32> to vector<2x32xbf16>
    %c0_22 = arith.constant 0 : index
    %c0_23 = arith.constant 0 : index
    %47 = vector.load %arg7[%c0_22, %c0_23] : memref<32x128xbf16, #tpu.memory_space<vmem>>, vector<32x128xbf16>
    %cst_24 = arith.constant dense<0.000000e+00> : vector<2x128xf32>
    %48 = tpu.matmul %46, %47, %cst_24 {dimension_numbers = #tpu.dot_dimension_numbers<[1], [0], [0], [1], [0, 0, 1, 1], [], []>} : vector<2x32xbf16>, vector<32x128xbf16>, vector<2x128xf32> -> vector<2x128xf32>
    %49 = arith.index_cast %c1_i32 : i32 to index
    %c0_25 = arith.constant 0 : index
    %c0_26 = arith.constant 0 : index
    %50 = vector.load %arg2[%49, %c0_25, %c0_26] : memref<8x2x128xbf16, #tpu.memory_space<vmem>>, vector<1x2x128xbf16>
    %51 = vector.shape_cast %50 : vector<1x2x128xbf16> to vector<2x128xbf16>
    %52 = arith.extf %51 : vector<2x128xbf16> to vector<2x128xf32>
    %53 = arith.addf %52, %48 : vector<2x128xf32>
    %54 = vector.extract_strided_slice %53 {offsets = [0, 0], sizes = [2, 32], strides = [1, 1]} : vector<2x128xf32> to vector<2x32xf32>
    %55 = arith.negf %54 : vector<2x32xf32>
    %56 = math.exp %55 : vector<2x32xf32>
    %cst_27 = arith.constant 1.000000e+00 : f32
    %57 = vector.broadcast %cst_27 : f32 to vector<2x32xf32>
    %58 = arith.addf %57, %56 : vector<2x32xf32>
    %59 = arith.divf %57, %58 : vector<2x32xf32>
    %60 = vector.extract_strided_slice %53 {offsets = [0, 32], sizes = [2, 32], strides = [1, 1]} : vector<2x128xf32> to vector<2x32xf32>
    %61 = arith.negf %60 : vector<2x32xf32>
    %62 = math.exp %61 : vector<2x32xf32>
    %cst_28 = arith.constant 1.000000e+00 : f32
    %63 = vector.broadcast %cst_28 : f32 to vector<2x32xf32>
    %64 = arith.addf %63, %62 : vector<2x32xf32>
    %65 = arith.divf %63, %64 : vector<2x32xf32>
    %66 = vector.extract_strided_slice %53 {offsets = [0, 64], sizes = [2, 32], strides = [1, 1]} : vector<2x128xf32> to vector<2x32xf32>
    %67 = math.tanh %66 : vector<2x32xf32>
    %68 = vector.extract_strided_slice %53 {offsets = [0, 96], sizes = [2, 32], strides = [1, 1]} : vector<2x128xf32> to vector<2x32xf32>
    %69 = arith.negf %68 : vector<2x32xf32>
    %70 = math.exp %69 : vector<2x32xf32>
    %cst_29 = arith.constant 1.000000e+00 : f32
    %71 = vector.broadcast %cst_29 : f32 to vector<2x32xf32>
    %72 = arith.addf %71, %70 : vector<2x32xf32>
    %73 = arith.divf %71, %72 : vector<2x32xf32>
    %74 = arith.mulf %65, %45 : vector<2x32xf32>
    %75 = arith.mulf %59, %67 : vector<2x32xf32>
    %76 = arith.addf %74, %75 : vector<2x32xf32>
    %77 = math.tanh %76 : vector<2x32xf32>
    %78 = arith.mulf %73, %77 : vector<2x32xf32>
    %c0_30 = arith.constant 0 : index
    %c0_31 = arith.constant 0 : index
    %79 = vector.load %arg9[%c0_30, %c0_31] : memref<2x32xf32, #tpu.memory_space<vmem>>, vector<2x32xf32>
    tpu.vector_store %arg9[%c0_30, %c0_31], %76 {strides = array<i32>} : memref<2x32xf32, #tpu.memory_space<vmem>>, vector<2x32xf32>,
    %c0_32 = arith.constant 0 : index
    %c0_33 = arith.constant 0 : index
    %80 = vector.load %arg8[%c0_32, %c0_33] : memref<2x32xf32, #tpu.memory_space<vmem>>, vector<2x32xf32>
    tpu.vector_store %arg8[%c0_32, %c0_33], %78 {strides = array<i32>} : memref<2x32xf32, #tpu.memory_space<vmem>>, vector<2x32xf32>,
    %81 = vector.shape_cast %78 : vector<2x32xf32> to vector<2x1x32xf32>
    %82 = arith.truncf %81 : vector<2x1x32xf32> to vector<2x1x32xbf16>
    %c0_34 = arith.constant 0 : index
    %83 = arith.index_cast %c1_i32 : i32 to index
    %c0_35 = arith.constant 0 : index
    %84 = vector.load %arg6[%c0_34, %83, %c0_35] : memref<2x8x32xbf16, #tpu.memory_space<vmem>>, vector<2x1x32xbf16>
    tpu.vector_store %arg6[%c0_34, %83, %c0_35], %82 {strides = array<i32>} : memref<2x8x32xbf16, #tpu.memory_space<vmem>>, vector<2x1x32xbf16>,
    %c2_i32 = arith.constant 2 : i32
    %c0_36 = arith.constant 0 : index
    %c0_37 = arith.constant 0 : index
    %85 = vector.load %arg8[%c0_36, %c0_37] : memref<2x32xf32, #tpu.memory_space<vmem>>, vector<2x32xf32>
    %c0_38 = arith.constant 0 : index
    %c0_39 = arith.constant 0 : index
    %86 = vector.load %arg9[%c0_38, %c0_39] : memref<2x32xf32, #tpu.memory_space<vmem>>, vector<2x32xf32>
    %87 = arith.truncf %85 : vector<2x32xf32> to vector<2x32xbf16>
    %c0_40 = arith.constant 0 : index
    %c0_41 = arith.constant 0 : index
    %88 = vector.load %arg7[%c0_40, %c0_41] : memref<32x128xbf16, #tpu.memory_space<vmem>>, vector<32x128xbf16>
    %cst_42 = arith.constant dense<0.000000e+00> : vector<2x128xf32>
    %89 = tpu.matmul %87, %88, %cst_42 {dimension_numbers = #tpu.dot_dimension_numbers<[1], [0], [0], [1], [0, 0, 1, 1], [], []>} : vector<2x32xbf16>, vector<32x128xbf16>, vector<2x128xf32> -> vector<2x128xf32>
    %90 = arith.index_cast %c2_i32 : i32 to index
    %c0_43 = arith.constant 0 : index
    %c0_44 = arith.constant 0 : index
    %91 = vector.load %arg2[%90, %c0_43, %c0_44] : memref<8x2x128xbf16, #tpu.memory_space<vmem>>, vector<1x2x128xbf16>
    %92 = vector.shape_cast %91 : vector<1x2x128xbf16> to vector<2x128xbf16>
    %93 = arith.extf %92 : vector<2x128xbf16> to vector<2x128xf32>
    %94 = arith.addf %93, %89 : vector<2x128xf32>
    %95 = vector.extract_strided_slice %94 {offsets = [0, 0], sizes = [2, 32], strides = [1, 1]} : vector<2x128xf32> to vector<2x32xf32>
    %96 = arith.negf %95 : vector<2x32xf32>
    %97 = math.exp %96 : vector<2x32xf32>
    %cst_45 = arith.constant 1.000000e+00 : f32
    %98 = vector.broadcast %cst_45 : f32 to vector<2x32xf32>
    %99 = arith.addf %98, %97 : vector<2x32xf32>
    %100 = arith.divf %98, %99 : vector<2x32xf32>
    %101 = vector.extract_strided_slice %94 {offsets = [0, 32], sizes = [2, 32], strides = [1, 1]} : vector<2x128xf32> to vector<2x32xf32>
    %102 = arith.negf %101 : vector<2x32xf32>
    %103 = math.exp %102 : vector<2x32xf32>
    %cst_46 = arith.constant 1.000000e+00 : f32
    %104 = vector.broadcast %cst_46 : f32 to vector<2x32xf32>
    %105 = arith.addf %104, %103 : vector<2x32xf32>
    %106 = arith.divf %104, %105 : vector<2x32xf32>
    %107 = vector.extract_strided_slice %94 {offsets = [0, 64], sizes = [2, 32], strides = [1, 1]} : vector<2x128xf32> to vector<2x32xf32>
    %108 = math.tanh %107 : vector<2x32xf32>
    %109 = vector.extract_strided_slice %94 {offsets = [0, 96], sizes = [2, 32], strides = [1, 1]} : vector<2x128xf32> to vector<2x32xf32>
    %110 = arith.negf %109 : vector<2x32xf32>
    %111 = math.exp %110 : vector<2x32xf32>
    %cst_47 = arith.constant 1.000000e+00 : f32
    %112 = vector.broadcast %cst_47 : f32 to vector<2x32xf32>
    %113 = arith.addf %112, %111 : vector<2x32xf32>
    %114 = arith.divf %112, %113 : vector<2x32xf32>
    %115 = arith.mulf %106, %86 : vector<2x32xf32>
    %116 = arith.mulf %100, %108 : vector<2x32xf32>
    %117 = arith.addf %115, %116 : vector<2x32xf32>
    %118 = math.tanh %117 : vector<2x32xf32>
    %119 = arith.mulf %114, %118 : vector<2x32xf32>
    %c0_48 = arith.constant 0 : index
    %c0_49 = arith.constant 0 : index
    %120 = vector.load %arg9[%c0_48, %c0_49] : memref<2x32xf32, #tpu.memory_space<vmem>>, vector<2x32xf32>
    tpu.vector_store %arg9[%c0_48, %c0_49], %117 {strides = array<i32>} : memref<2x32xf32, #tpu.memory_space<vmem>>, vector<2x32xf32>,
    %c0_50 = arith.constant 0 : index
    %c0_51 = arith.constant 0 : index
    %121 = vector.load %arg8[%c0_50, %c0_51] : memref<2x32xf32, #tpu.memory_space<vmem>>, vector<2x32xf32>
    tpu.vector_store %arg8[%c0_50, %c0_51], %119 {strides = array<i32>} : memref<2x32xf32, #tpu.memory_space<vmem>>, vector<2x32xf32>,
    %122 = vector.shape_cast %119 : vector<2x32xf32> to vector<2x1x32xf32>
    %123 = arith.truncf %122 : vector<2x1x32xf32> to vector<2x1x32xbf16>
    %c0_52 = arith.constant 0 : index
    %124 = arith.index_cast %c2_i32 : i32 to index
    %c0_53 = arith.constant 0 : index
    %125 = vector.load %arg6[%c0_52, %124, %c0_53] : memref<2x8x32xbf16, #tpu.memory_space<vmem>>, vector<2x1x32xbf16>
    tpu.vector_store %arg6[%c0_52, %124, %c0_53], %123 {strides = array<i32>} : memref<2x8x32xbf16, #tpu.memory_space<vmem>>, vector<2x1x32xbf16>,
    %c3_i32 = arith.constant 3 : i32
    %c0_54 = arith.constant 0 : index
    %c0_55 = arith.constant 0 : index
    %126 = vector.load %arg8[%c0_54, %c0_55] : memref<2x32xf32, #tpu.memory_space<vmem>>, vector<2x32xf32>
    %c0_56 = arith.constant 0 : index
    %c0_57 = arith.constant 0 : index
    %127 = vector.load %arg9[%c0_56, %c0_57] : memref<2x32xf32, #tpu.memory_space<vmem>>, vector<2x32xf32>
    %128 = arith.truncf %126 : vector<2x32xf32> to vector<2x32xbf16>
    %c0_58 = arith.constant 0 : index
    %c0_59 = arith.constant 0 : index
    %129 = vector.load %arg7[%c0_58, %c0_59] : memref<32x128xbf16, #tpu.memory_space<vmem>>, vector<32x128xbf16>
    %cst_60 = arith.constant dense<0.000000e+00> : vector<2x128xf32>
    %130 = tpu.matmul %128, %129, %cst_60 {dimension_numbers = #tpu.dot_dimension_numbers<[1], [0], [0], [1], [0, 0, 1, 1], [], []>} : vector<2x32xbf16>, vector<32x128xbf16>, vector<2x128xf32> -> vector<2x128xf32>
    %131 = arith.index_cast %c3_i32 : i32 to index
    %c0_61 = arith.constant 0 : index
    %c0_62 = arith.constant 0 : index
    %132 = vector.load %arg2[%131, %c0_61, %c0_62] : memref<8x2x128xbf16, #tpu.memory_space<vmem>>, vector<1x2x128xbf16>
    %133 = vector.shape_cast %132 : vector<1x2x128xbf16> to vector<2x128xbf16>
    %134 = arith.extf %133 : vector<2x128xbf16> to vector<2x128xf32>
    %135 = arith.addf %134, %130 : vector<2x128xf32>
    %136 = vector.extract_strided_slice %135 {offsets = [0, 0], sizes = [2, 32], strides = [1, 1]} : vector<2x128xf32> to vector<2x32xf32>
    %137 = arith.negf %136 : vector<2x32xf32>
    %138 = math.exp %137 : vector<2x32xf32>
    %cst_63 = arith.constant 1.000000e+00 : f32
    %139 = vector.broadcast %cst_63 : f32 to vector<2x32xf32>
    %140 = arith.addf %139, %138 : vector<2x32xf32>
    %141 = arith.divf %139, %140 : vector<2x32xf32>
    %142 = vector.extract_strided_slice %135 {offsets = [0, 32], sizes = [2, 32], strides = [1, 1]} : vector<2x128xf32> to vector<2x32xf32>
    %143 = arith.negf %142 : vector<2x32xf32>
    %144 = math.exp %143 : vector<2x32xf32>
    %cst_64 = arith.constant 1.000000e+00 : f32
    %145 = vector.broadcast %cst_64 : f32 to vector<2x32xf32>
    %146 = arith.addf %145, %144 : vector<2x32xf32>
    %147 = arith.divf %145, %146 : vector<2x32xf32>
    %148 = vector.extract_strided_slice %135 {offsets = [0, 64], sizes = [2, 32], strides = [1, 1]} : vector<2x128xf32> to vector<2x32xf32>
    %149 = math.tanh %148 : vector<2x32xf32>
    %150 = vector.extract_strided_slice %135 {offsets = [0, 96], sizes = [2, 32], strides = [1, 1]} : vector<2x128xf32> to vector<2x32xf32>
    %151 = arith.negf %150 : vector<2x32xf32>
    %152 = math.exp %151 : vector<2x32xf32>
    %cst_65 = arith.constant 1.000000e+00 : f32
    %153 = vector.broadcast %cst_65 : f32 to vector<2x32xf32>
    %154 = arith.addf %153, %152 : vector<2x32xf32>
    %155 = arith.divf %153, %154 : vector<2x32xf32>
    %156 = arith.mulf %147, %127 : vector<2x32xf32>
    %157 = arith.mulf %141, %149 : vector<2x32xf32>
    %158 = arith.addf %156, %157 : vector<2x32xf32>
    %159 = math.tanh %158 : vector<2x32xf32>
    %160 = arith.mulf %155, %159 : vector<2x32xf32>
    %c0_66 = arith.constant 0 : index
    %c0_67 = arith.constant 0 : index
    %161 = vector.load %arg9[%c0_66, %c0_67] : memref<2x32xf32, #tpu.memory_space<vmem>>, vector<2x32xf32>
    tpu.vector_store %arg9[%c0_66, %c0_67], %158 {strides = array<i32>} : memref<2x32xf32, #tpu.memory_space<vmem>>, vector<2x32xf32>,
    %c0_68 = arith.constant 0 : index
    %c0_69 = arith.constant 0 : index
    %162 = vector.load %arg8[%c0_68, %c0_69] : memref<2x32xf32, #tpu.memory_space<vmem>>, vector<2x32xf32>
    tpu.vector_store %arg8[%c0_68, %c0_69], %160 {strides = array<i32>} : memref<2x32xf32, #tpu.memory_space<vmem>>, vector<2x32xf32>,
    %163 = vector.shape_cast %160 : vector<2x32xf32> to vector<2x1x32xf32>
    %164 = arith.truncf %163 : vector<2x1x32xf32> to vector<2x1x32xbf16>
    %c0_70 = arith.constant 0 : index
    %165 = arith.index_cast %c3_i32 : i32 to index
    %c0_71 = arith.constant 0 : index
    %166 = vector.load %arg6[%c0_70, %165, %c0_71] : memref<2x8x32xbf16, #tpu.memory_space<vmem>>, vector<2x1x32xbf16>
    tpu.vector_store %arg6[%c0_70, %165, %c0_71], %164 {strides = array<i32>} : memref<2x8x32xbf16, #tpu.memory_space<vmem>>, vector<2x1x32xbf16>,
    %c4_i32 = arith.constant 4 : i32
    %c0_72 = arith.constant 0 : index
    %c0_73 = arith.constant 0 : index
    %167 = vector.load %arg8[%c0_72, %c0_73] : memref<2x32xf32, #tpu.memory_space<vmem>>, vector<2x32xf32>
    %c0_74 = arith.constant 0 : index
    %c0_75 = arith.constant 0 : index
    %168 = vector.load %arg9[%c0_74, %c0_75] : memref<2x32xf32, #tpu.memory_space<vmem>>, vector<2x32xf32>
    %169 = arith.truncf %167 : vector<2x32xf32> to vector<2x32xbf16>
    %c0_76 = arith.constant 0 : index
    %c0_77 = arith.constant 0 : index
    %170 = vector.load %arg7[%c0_76, %c0_77] : memref<32x128xbf16, #tpu.memory_space<vmem>>, vector<32x128xbf16>
    %cst_78 = arith.constant dense<0.000000e+00> : vector<2x128xf32>
    %171 = tpu.matmul %169, %170, %cst_78 {dimension_numbers = #tpu.dot_dimension_numbers<[1], [0], [0], [1], [0, 0, 1, 1], [], []>} : vector<2x32xbf16>, vector<32x128xbf16>, vector<2x128xf32> -> vector<2x128xf32>
    %172 = arith.index_cast %c4_i32 : i32 to index
    %c0_79 = arith.constant 0 : index
    %c0_80 = arith.constant 0 : index
    %173 = vector.load %arg2[%172, %c0_79, %c0_80] : memref<8x2x128xbf16, #tpu.memory_space<vmem>>, vector<1x2x128xbf16>
    %174 = vector.shape_cast %173 : vector<1x2x128xbf16> to vector<2x128xbf16>
    %175 = arith.extf %174 : vector<2x128xbf16> to vector<2x128xf32>
    %176 = arith.addf %175, %171 : vector<2x128xf32>
    %177 = vector.extract_strided_slice %176 {offsets = [0, 0], sizes = [2, 32], strides = [1, 1]} : vector<2x128xf32> to vector<2x32xf32>
    %178 = arith.negf %177 : vector<2x32xf32>
    %179 = math.exp %178 : vector<2x32xf32>
    %cst_81 = arith.constant 1.000000e+00 : f32
    %180 = vector.broadcast %cst_81 : f32 to vector<2x32xf32>
    %181 = arith.addf %180, %179 : vector<2x32xf32>
    %182 = arith.divf %180, %181 : vector<2x32xf32>
    %183 = vector.extract_strided_slice %176 {offsets = [0, 32], sizes = [2, 32], strides = [1, 1]} : vector<2x128xf32> to vector<2x32xf32>
    %184 = arith.negf %183 : vector<2x32xf32>
    %185 = math.exp %184 : vector<2x32xf32>
    %cst_82 = arith.constant 1.000000e+00 : f32
    %186 = vector.broadcast %cst_82 : f32 to vector<2x32xf32>
    %187 = arith.addf %186, %185 : vector<2x32xf32>
    %188 = arith.divf %186, %187 : vector<2x32xf32>
    %189 = vector.extract_strided_slice %176 {offsets = [0, 64], sizes = [2, 32], strides = [1, 1]} : vector<2x128xf32> to vector<2x32xf32>
    %190 = math.tanh %189 : vector<2x32xf32>
    %191 = vector.extract_strided_slice %176 {offsets = [0, 96], sizes = [2, 32], strides = [1, 1]} : vector<2x128xf32> to vector<2x32xf32>
    %192 = arith.negf %191 : vector<2x32xf32>
    %193 = math.exp %192 : vector<2x32xf32>
    %cst_83 = arith.constant 1.000000e+00 : f32
    %194 = vector.broadcast %cst_83 : f32 to vector<2x32xf32>
    %195 = arith.addf %194, %193 : vector<2x32xf32>
    %196 = arith.divf %194, %195 : vector<2x32xf32>
    %197 = arith.mulf %188, %168 : vector<2x32xf32>
    %198 = arith.mulf %182, %190 : vector<2x32xf32>
    %199 = arith.addf %197, %198 : vector<2x32xf32>
    %200 = math.tanh %199 : vector<2x32xf32>
    %201 = arith.mulf %196, %200 : vector<2x32xf32>
    %c0_84 = arith.constant 0 : index
    %c0_85 = arith.constant 0 : index
    %202 = vector.load %arg9[%c0_84, %c0_85] : memref<2x32xf32, #tpu.memory_space<vmem>>, vector<2x32xf32>
    tpu.vector_store %arg9[%c0_84, %c0_85], %199 {strides = array<i32>} : memref<2x32xf32, #tpu.memory_space<vmem>>, vector<2x32xf32>,
    %c0_86 = arith.constant 0 : index
    %c0_87 = arith.constant 0 : index
    %203 = vector.load %arg8[%c0_86, %c0_87] : memref<2x32xf32, #tpu.memory_space<vmem>>, vector<2x32xf32>
    tpu.vector_store %arg8[%c0_86, %c0_87], %201 {strides = array<i32>} : memref<2x32xf32, #tpu.memory_space<vmem>>, vector<2x32xf32>,
    %204 = vector.shape_cast %201 : vector<2x32xf32> to vector<2x1x32xf32>
    %205 = arith.truncf %204 : vector<2x1x32xf32> to vector<2x1x32xbf16>
    %c0_88 = arith.constant 0 : index
    %206 = arith.index_cast %c4_i32 : i32 to index
    %c0_89 = arith.constant 0 : index
    %207 = vector.load %arg6[%c0_88, %206, %c0_89] : memref<2x8x32xbf16, #tpu.memory_space<vmem>>, vector<2x1x32xbf16>
    tpu.vector_store %arg6[%c0_88, %206, %c0_89], %205 {strides = array<i32>} : memref<2x8x32xbf16, #tpu.memory_space<vmem>>, vector<2x1x32xbf16>,
    %c5_i32 = arith.constant 5 : i32
    %c0_90 = arith.constant 0 : index
    %c0_91 = arith.constant 0 : index
    %208 = vector.load %arg8[%c0_90, %c0_91] : memref<2x32xf32, #tpu.memory_space<vmem>>, vector<2x32xf32>
    %c0_92 = arith.constant 0 : index
    %c0_93 = arith.constant 0 : index
    %209 = vector.load %arg9[%c0_92, %c0_93] : memref<2x32xf32, #tpu.memory_space<vmem>>, vector<2x32xf32>
    %210 = arith.truncf %208 : vector<2x32xf32> to vector<2x32xbf16>
    %c0_94 = arith.constant 0 : index
    %c0_95 = arith.constant 0 : index
    %211 = vector.load %arg7[%c0_94, %c0_95] : memref<32x128xbf16, #tpu.memory_space<vmem>>, vector<32x128xbf16>
    %cst_96 = arith.constant dense<0.000000e+00> : vector<2x128xf32>
    %212 = tpu.matmul %210, %211, %cst_96 {dimension_numbers = #tpu.dot_dimension_numbers<[1], [0], [0], [1], [0, 0, 1, 1], [], []>} : vector<2x32xbf16>, vector<32x128xbf16>, vector<2x128xf32> -> vector<2x128xf32>
    %213 = arith.index_cast %c5_i32 : i32 to index
    %c0_97 = arith.constant 0 : index
    %c0_98 = arith.constant 0 : index
    %214 = vector.load %arg2[%213, %c0_97, %c0_98] : memref<8x2x128xbf16, #tpu.memory_space<vmem>>, vector<1x2x128xbf16>
    %215 = vector.shape_cast %214 : vector<1x2x128xbf16> to vector<2x128xbf16>
    %216 = arith.extf %215 : vector<2x128xbf16> to vector<2x128xf32>
    %217 = arith.addf %216, %212 : vector<2x128xf32>
    %218 = vector.extract_strided_slice %217 {offsets = [0, 0], sizes = [2, 32], strides = [1, 1]} : vector<2x128xf32> to vector<2x32xf32>
    %219 = arith.negf %218 : vector<2x32xf32>
    %220 = math.exp %219 : vector<2x32xf32>
    %cst_99 = arith.constant 1.000000e+00 : f32
    %221 = vector.broadcast %cst_99 : f32 to vector<2x32xf32>
    %222 = arith.addf %221, %220 : vector<2x32xf32>
    %223 = arith.divf %221, %222 : vector<2x32xf32>
    %224 = vector.extract_strided_slice %217 {offsets = [0, 32], sizes = [2, 32], strides = [1, 1]} : vector<2x128xf32> to vector<2x32xf32>
    %225 = arith.negf %224 : vector<2x32xf32>
    %226 = math.exp %225 : vector<2x32xf32>
    %cst_100 = arith.constant 1.000000e+00 : f32
    %227 = vector.broadcast %cst_100 : f32 to vector<2x32xf32>
    %228 = arith.addf %227, %226 : vector<2x32xf32>
    %229 = arith.divf %227, %228 : vector<2x32xf32>
    %230 = vector.extract_strided_slice %217 {offsets = [0, 64], sizes = [2, 32], strides = [1, 1]} : vector<2x128xf32> to vector<2x32xf32>
    %231 = math.tanh %230 : vector<2x32xf32>
    %232 = vector.extract_strided_slice %217 {offsets = [0, 96], sizes = [2, 32], strides = [1, 1]} : vector<2x128xf32> to vector<2x32xf32>
    %233 = arith.negf %232 : vector<2x32xf32>
    %234 = math.exp %233 : vector<2x32xf32>
    %cst_101 = arith.constant 1.000000e+00 : f32
    %235 = vector.broadcast %cst_101 : f32 to vector<2x32xf32>
    %236 = arith.addf %235, %234 : vector<2x32xf32>
    %237 = arith.divf %235, %236 : vector<2x32xf32>
    %238 = arith.mulf %229, %209 : vector<2x32xf32>
    %239 = arith.mulf %223, %231 : vector<2x32xf32>
    %240 = arith.addf %238, %239 : vector<2x32xf32>
    %241 = math.tanh %240 : vector<2x32xf32>
    %242 = arith.mulf %237, %241 : vector<2x32xf32>
    %c0_102 = arith.constant 0 : index
    %c0_103 = arith.constant 0 : index
    %243 = vector.load %arg9[%c0_102, %c0_103] : memref<2x32xf32, #tpu.memory_space<vmem>>, vector<2x32xf32>
    tpu.vector_store %arg9[%c0_102, %c0_103], %240 {strides = array<i32>} : memref<2x32xf32, #tpu.memory_space<vmem>>, vector<2x32xf32>,
    %c0_104 = arith.constant 0 : index
    %c0_105 = arith.constant 0 : index
    %244 = vector.load %arg8[%c0_104, %c0_105] : memref<2x32xf32, #tpu.memory_space<vmem>>, vector<2x32xf32>
    tpu.vector_store %arg8[%c0_104, %c0_105], %242 {strides = array<i32>} : memref<2x32xf32, #tpu.memory_space<vmem>>, vector<2x32xf32>,
    %245 = vector.shape_cast %242 : vector<2x32xf32> to vector<2x1x32xf32>
    %246 = arith.truncf %245 : vector<2x1x32xf32> to vector<2x1x32xbf16>
    %c0_106 = arith.constant 0 : index
    %247 = arith.index_cast %c5_i32 : i32 to index
    %c0_107 = arith.constant 0 : index
    %248 = vector.load %arg6[%c0_106, %247, %c0_107] : memref<2x8x32xbf16, #tpu.memory_space<vmem>>, vector<2x1x32xbf16>
    tpu.vector_store %arg6[%c0_106, %247, %c0_107], %246 {strides = array<i32>} : memref<2x8x32xbf16, #tpu.memory_space<vmem>>, vector<2x1x32xbf16>,
    %c6_i32 = arith.constant 6 : i32
    %c0_108 = arith.constant 0 : index
    %c0_109 = arith.constant 0 : index
    %249 = vector.load %arg8[%c0_108, %c0_109] : memref<2x32xf32, #tpu.memory_space<vmem>>, vector<2x32xf32>
    %c0_110 = arith.constant 0 : index
    %c0_111 = arith.constant 0 : index
    %250 = vector.load %arg9[%c0_110, %c0_111] : memref<2x32xf32, #tpu.memory_space<vmem>>, vector<2x32xf32>
    %251 = arith.truncf %249 : vector<2x32xf32> to vector<2x32xbf16>
    %c0_112 = arith.constant 0 : index
    %c0_113 = arith.constant 0 : index
    %252 = vector.load %arg7[%c0_112, %c0_113] : memref<32x128xbf16, #tpu.memory_space<vmem>>, vector<32x128xbf16>
    %cst_114 = arith.constant dense<0.000000e+00> : vector<2x128xf32>
    %253 = tpu.matmul %251, %252, %cst_114 {dimension_numbers = #tpu.dot_dimension_numbers<[1], [0], [0], [1], [0, 0, 1, 1], [], []>} : vector<2x32xbf16>, vector<32x128xbf16>, vector<2x128xf32> -> vector<2x128xf32>
    %254 = arith.index_cast %c6_i32 : i32 to index
    %c0_115 = arith.constant 0 : index
    %c0_116 = arith.constant 0 : index
    %255 = vector.load %arg2[%254, %c0_115, %c0_116] : memref<8x2x128xbf16, #tpu.memory_space<vmem>>, vector<1x2x128xbf16>
    %256 = vector.shape_cast %255 : vector<1x2x128xbf16> to vector<2x128xbf16>
    %257 = arith.extf %256 : vector<2x128xbf16> to vector<2x128xf32>
    %258 = arith.addf %257, %253 : vector<2x128xf32>
    %259 = vector.extract_strided_slice %258 {offsets = [0, 0], sizes = [2, 32], strides = [1, 1]} : vector<2x128xf32> to vector<2x32xf32>
    %260 = arith.negf %259 : vector<2x32xf32>
    %261 = math.exp %260 : vector<2x32xf32>
    %cst_117 = arith.constant 1.000000e+00 : f32
    %262 = vector.broadcast %cst_117 : f32 to vector<2x32xf32>
    %263 = arith.addf %262, %261 : vector<2x32xf32>
    %264 = arith.divf %262, %263 : vector<2x32xf32>
    %265 = vector.extract_strided_slice %258 {offsets = [0, 32], sizes = [2, 32], strides = [1, 1]} : vector<2x128xf32> to vector<2x32xf32>
    %266 = arith.negf %265 : vector<2x32xf32>
    %267 = math.exp %266 : vector<2x32xf32>
    %cst_118 = arith.constant 1.000000e+00 : f32
    %268 = vector.broadcast %cst_118 : f32 to vector<2x32xf32>
    %269 = arith.addf %268, %267 : vector<2x32xf32>
    %270 = arith.divf %268, %269 : vector<2x32xf32>
    %271 = vector.extract_strided_slice %258 {offsets = [0, 64], sizes = [2, 32], strides = [1, 1]} : vector<2x128xf32> to vector<2x32xf32>
    %272 = math.tanh %271 : vector<2x32xf32>
    %273 = vector.extract_strided_slice %258 {offsets = [0, 96], sizes = [2, 32], strides = [1, 1]} : vector<2x128xf32> to vector<2x32xf32>
    %274 = arith.negf %273 : vector<2x32xf32>
    %275 = math.exp %274 : vector<2x32xf32>
    %cst_119 = arith.constant 1.000000e+00 : f32
    %276 = vector.broadcast %cst_119 : f32 to vector<2x32xf32>
    %277 = arith.addf %276, %275 : vector<2x32xf32>
    %278 = arith.divf %276, %277 : vector<2x32xf32>
    %279 = arith.mulf %270, %250 : vector<2x32xf32>
    %280 = arith.mulf %264, %272 : vector<2x32xf32>
    %281 = arith.addf %279, %280 : vector<2x32xf32>
    %282 = math.tanh %281 : vector<2x32xf32>
    %283 = arith.mulf %278, %282 : vector<2x32xf32>
    %c0_120 = arith.constant 0 : index
    %c0_121 = arith.constant 0 : index
    %284 = vector.load %arg9[%c0_120, %c0_121] : memref<2x32xf32, #tpu.memory_space<vmem>>, vector<2x32xf32>
    tpu.vector_store %arg9[%c0_120, %c0_121], %281 {strides = array<i32>} : memref<2x32xf32, #tpu.memory_space<vmem>>, vector<2x32xf32>,
    %c0_122 = arith.constant 0 : index
    %c0_123 = arith.constant 0 : index
    %285 = vector.load %arg8[%c0_122, %c0_123] : memref<2x32xf32, #tpu.memory_space<vmem>>, vector<2x32xf32>
    tpu.vector_store %arg8[%c0_122, %c0_123], %283 {strides = array<i32>} : memref<2x32xf32, #tpu.memory_space<vmem>>, vector<2x32xf32>,
    %286 = vector.shape_cast %283 : vector<2x32xf32> to vector<2x1x32xf32>
    %287 = arith.truncf %286 : vector<2x1x32xf32> to vector<2x1x32xbf16>
    %c0_124 = arith.constant 0 : index
    %288 = arith.index_cast %c6_i32 : i32 to index
    %c0_125 = arith.constant 0 : index
    %289 = vector.load %arg6[%c0_124, %288, %c0_125] : memref<2x8x32xbf16, #tpu.memory_space<vmem>>, vector<2x1x32xbf16>
    tpu.vector_store %arg6[%c0_124, %288, %c0_125], %287 {strides = array<i32>} : memref<2x8x32xbf16, #tpu.memory_space<vmem>>, vector<2x1x32xbf16>,
    %c7_i32 = arith.constant 7 : i32
    %c0_126 = arith.constant 0 : index
    %c0_127 = arith.constant 0 : index
    %290 = vector.load %arg8[%c0_126, %c0_127] : memref<2x32xf32, #tpu.memory_space<vmem>>, vector<2x32xf32>
    %c0_128 = arith.constant 0 : index
    %c0_129 = arith.constant 0 : index
    %291 = vector.load %arg9[%c0_128, %c0_129] : memref<2x32xf32, #tpu.memory_space<vmem>>, vector<2x32xf32>
    %292 = arith.truncf %290 : vector<2x32xf32> to vector<2x32xbf16>
    %c0_130 = arith.constant 0 : index
    %c0_131 = arith.constant 0 : index
    %293 = vector.load %arg7[%c0_130, %c0_131] : memref<32x128xbf16, #tpu.memory_space<vmem>>, vector<32x128xbf16>
    %cst_132 = arith.constant dense<0.000000e+00> : vector<2x128xf32>
    %294 = tpu.matmul %292, %293, %cst_132 {dimension_numbers = #tpu.dot_dimension_numbers<[1], [0], [0], [1], [0, 0, 1, 1], [], []>} : vector<2x32xbf16>, vector<32x128xbf16>, vector<2x128xf32> -> vector<2x128xf32>
    %295 = arith.index_cast %c7_i32 : i32 to index
    %c0_133 = arith.constant 0 : index
    %c0_134 = arith.constant 0 : index
    %296 = vector.load %arg2[%295, %c0_133, %c0_134] : memref<8x2x128xbf16, #tpu.memory_space<vmem>>, vector<1x2x128xbf16>
    %297 = vector.shape_cast %296 : vector<1x2x128xbf16> to vector<2x128xbf16>
    %298 = arith.extf %297 : vector<2x128xbf16> to vector<2x128xf32>
    %299 = arith.addf %298, %294 : vector<2x128xf32>
    %300 = vector.extract_strided_slice %299 {offsets = [0, 0], sizes = [2, 32], strides = [1, 1]} : vector<2x128xf32> to vector<2x32xf32>
    %301 = arith.negf %300 : vector<2x32xf32>
    %302 = math.exp %301 : vector<2x32xf32>
    %cst_135 = arith.constant 1.000000e+00 : f32
    %303 = vector.broadcast %cst_135 : f32 to vector<2x32xf32>
    %304 = arith.addf %303, %302 : vector<2x32xf32>
    %305 = arith.divf %303, %304 : vector<2x32xf32>
    %306 = vector.extract_strided_slice %299 {offsets = [0, 32], sizes = [2, 32], strides = [1, 1]} : vector<2x128xf32> to vector<2x32xf32>
    %307 = arith.negf %306 : vector<2x32xf32>
    %308 = math.exp %307 : vector<2x32xf32>
    %cst_136 = arith.constant 1.000000e+00 : f32
    %309 = vector.broadcast %cst_136 : f32 to vector<2x32xf32>
    %310 = arith.addf %309, %308 : vector<2x32xf32>
    %311 = arith.divf %309, %310 : vector<2x32xf32>
    %312 = vector.extract_strided_slice %299 {offsets = [0, 64], sizes = [2, 32], strides = [1, 1]} : vector<2x128xf32> to vector<2x32xf32>
    %313 = math.tanh %312 : vector<2x32xf32>
    %314 = vector.extract_strided_slice %299 {offsets = [0, 96], sizes = [2, 32], strides = [1, 1]} : vector<2x128xf32> to vector<2x32xf32>
    %315 = arith.negf %314 : vector<2x32xf32>
    %316 = math.exp %315 : vector<2x32xf32>
    %cst_137 = arith.constant 1.000000e+00 : f32
    %317 = vector.broadcast %cst_137 : f32 to vector<2x32xf32>
    %318 = arith.addf %317, %316 : vector<2x32xf32>
    %319 = arith.divf %317, %318 : vector<2x32xf32>
    %320 = arith.mulf %311, %291 : vector<2x32xf32>
    %321 = arith.mulf %305, %313 : vector<2x32xf32>
    %322 = arith.addf %320, %321 : vector<2x32xf32>
    %323 = math.tanh %322 : vector<2x32xf32>
    %324 = arith.mulf %319, %323 : vector<2x32xf32>
    %c0_138 = arith.constant 0 : index
    %c0_139 = arith.constant 0 : index
    %325 = vector.load %arg9[%c0_138, %c0_139] : memref<2x32xf32, #tpu.memory_space<vmem>>, vector<2x32xf32>
    tpu.vector_store %arg9[%c0_138, %c0_139], %322 {strides = array<i32>} : memref<2x32xf32, #tpu.memory_space<vmem>>, vector<2x32xf32>,
    %c0_140 = arith.constant 0 : index
    %c0_141 = arith.constant 0 : index
    %326 = vector.load %arg8[%c0_140, %c0_141] : memref<2x32xf32, #tpu.memory_space<vmem>>, vector<2x32xf32>
    tpu.vector_store %arg8[%c0_140, %c0_141], %324 {strides = array<i32>} : memref<2x32xf32, #tpu.memory_space<vmem>>, vector<2x32xf32>,
    %327 = vector.shape_cast %324 : vector<2x32xf32> to vector<2x1x32xf32>
    %328 = arith.truncf %327 : vector<2x1x32xf32> to vector<2x1x32xbf16>
    %c0_142 = arith.constant 0 : index
    %329 = arith.index_cast %c7_i32 : i32 to index
    %c0_143 = arith.constant 0 : index
    %330 = vector.load %arg6[%c0_142, %329, %c0_143] : memref<2x8x32xbf16, #tpu.memory_space<vmem>>, vector<2x1x32xbf16>
    tpu.vector_store %arg6[%c0_142, %329, %c0_143], %328 {strides = array<i32>} : memref<2x8x32xbf16, #tpu.memory_space<vmem>>, vector<2x1x32xbf16>,
    %c8_i32 = arith.constant 8 : i32
    return
  }
  func.func @transform_0(%arg0: i32, %arg1: i32) -> (i32, i32, i32) {
    %c0_i32 = arith.constant 0 : i32
    %c0_i32_0 = arith.constant 0 : i32
    return %arg1, %arg0, %c0_i32 : i32, i32, i32
  }
  func.func @transform_1(%arg0: i32, %arg1: i32) -> (i32, i32) {
    %c0_i32 = arith.constant 0 : i32
    %c0_i32_0 = arith.constant 0 : i32
    return %arg0, %c0_i32 : i32, i32
  }
  func.func @transform_2(%arg0: i32, %arg1: i32) -> (i32, i32) {
    %c0_i32 = arith.constant 0 : i32
    %c0_i32_0 = arith.constant 0 : i32
    return %arg0, %c0_i32 : i32, i32
  }
  func.func @transform_4(%arg0: i32, %arg1: i32) -> (i32, i32, i32) {
    %c0_i32 = arith.constant 0 : i32
    %c0_i32_0 = arith.constant 0 : i32
    return %arg0, %arg1, %c0_i32 : i32, i32, i32
  }
}

</mosaic_0001>

<llo_original>
// kernel: tpu_custom_call.1
$region0: #{tpu_custom_call.1}
  #allocation0 [shape = 'u32[]', space=smem, size = 0x4, offset = 0x4, fixed_abs, tag = 'smem constant byte address 0x4 - core index']
  #allocation1 [shape = 'u32[144,128]{1,0:T(1,128)}', space=vmem, size = 0x12000, scoped, tag = 'internal scratch']
  #allocation2 [shape = 'bf16[32,128]{1,0:T(8,128)(2,1)}', space=vmem, size = 0x2000, scoped, tag = 'scratch operand']
  #allocation3 [shape = 'f32[2,32]{1,0:T(2,128)}', space=vmem, size = 0x400, scoped, tag = 'scratch operand']
  #allocation4 [shape = 'f32[2,32]{1,0:T(2,128)}', space=vmem, size = 0x400, scoped, tag = 'scratch operand']
  #allocation12 [shape = 's32[]', space=sflag, size = 0x4, offset = 0, fixed_abs, tag = 'sflag constant byte address 0x0 - dummy sync flag']
  #allocation13 [shape = 's32[]', space=sflag, size = 0x4, offset = 0, fixed_abs, tag = 'sflag constant byte address 0x0 - dummy sync flag']
  #allocation14 [shape = 'u32[]', space=smem, size = 0x4, offset = 0x44, fixed_abs, tag = 'smem constant byte address 0x44 - assertion arg 0']
  #allocation15 [shape = 'u32[]', space=smem, size = 0x4, offset = 0x48, fixed_abs, tag = 'smem constant byte address 0x48 - assertion arg 1']
  %s0 = inlined_call_operand.hbm [shape: bf16[8,2,128], index: 0, kind: input, shape index: {}]
  %s1 = inlined_call_operand.hbm [shape: f32[2,32], index: 1, kind: input, shape index: {}]
  %s2 = inlined_call_operand.vmem [shape: f32[2,32], index: 2, kind: input, shape index: {}]
  %s3 = inlined_call_operand.hbm [shape: bf16[32,128], index: 3, kind: input, shape index: {}]
  %s4 = inlined_call_operand.hbm [shape: bf16[2,8,32], index: 4, kind: output, shape index: {}]
  %s5 = sld [smem:[#allocation0]]
  $region39: #{tpu_custom_call.1} parent=0
    _
  %s7 = ssub.s32 1, %s5
  %s8 = scalar_select 0, %s7, %s5
  $region1: #{tpu_custom_call.1} parent=0
    #allocation5 [shape = 'u8[4096]{0}', space=vmem, size = 0x1000, scoped, tag = 'input window, operand 0, single buffered']
    #allocation6 [shape = 's32[1]{0}', space=sflag, size = 0x4, scoped, tag = 'scoped memory for tpu_custom_call.1']
    #allocation7 [shape = 's32[1]{0}', space=sflag, size = 0x4, scoped, tag = 'scoped memory for tpu_custom_call.1']
    #allocation8 [shape = 'u8[1024]{0}', space=vmem, size = 0x400, scoped, tag = 'input window, operand 1, single buffered']
    #allocation9 [shape = 's32[1]{0}', space=sflag, size = 0x4, scoped, tag = 'scoped memory for tpu_custom_call.1']
    #allocation10 [shape = 'u8[4096]{0}', space=vmem, size = 0x1000, scoped, tag = 'output window, operand 0, single buffered']
    %9 = vsyncpa [#allocation6], 0
    %10 = vsyncpa [#allocation9], 0
    %11 = vsyncpa [#allocation7], 0
    // Predicated region
    $region2: #{tpu_custom_call.1} parent=1 // pred_check
      _
    $region3: #{tpu_custom_call.1} parent=1 // pred_check_branch
      %13 = sbr.rel (0) target = $region5
    $region4: #{tpu_custom_call.1} parent=1 // pred_region
      %s15 = ssub.s32 128, 128
      %16 = vsyncadd [#allocation6], %s15
      %s17 = sshll.u32 [#allocation5], 4
      %s18 = int_to_ptr.vmem [resolvable:$true] %s17
      %23 = dma.hbm_to_vmem [thread:$0]  %s0, 128, %s18, [#allocation6], 16, 16, 1
    $region5: #{tpu_custom_call.1} parent=1 // pred_fallthru
      _
    // Predicated region
    $region6: #{tpu_custom_call.1} parent=1 // pred_check
      _
    $region7: #{tpu_custom_call.1} parent=1 // pred_check_branch
      %25 = sbr.rel (0) target = $region9
    $region8: #{tpu_custom_call.1} parent=1 // pred_region
      %s27 = ssub.s32 32, 32
      %28 = vsyncadd [#allocation9], %s27
      %s30 = sshll.u32 [#allocation8], 4
      %s31 = int_to_ptr.vmem [resolvable:$true] %s30
      %33 = dma.hbm_to_vmem [thread:$0]  %s1, 32, %s31, [#allocation9]
    $region9: #{tpu_custom_call.1} parent=1 // pred_fallthru
      _
    // Predicated region
    $region10: #{tpu_custom_call.1} parent=1 // pred_check
      _
    $region11: #{tpu_custom_call.1} parent=1 // pred_check_branch
      %35 = sbr.rel (0) target = $region13
    $region12: #{tpu_custom_call.1} parent=1 // pred_region
      _
    $region13: #{tpu_custom_call.1} parent=1 // pred_fallthru
      _
    // Predicated region
    $region14: #{tpu_custom_call.1} parent=1 // pred_check
      _
    $region15: #{tpu_custom_call.1} parent=1 // pred_check_branch
      %37 = sbr.rel (0) target = $region17
    $region16: #{tpu_custom_call.1} parent=1 // pred_region
      %38 = dma.done [#allocation6], 128
    $region17: #{tpu_custom_call.1} parent=1 // pred_fallthru
      _
    // Predicated region
    $region18: #{tpu_custom_call.1} parent=1 // pred_check
      _
    $region19: #{tpu_custom_call.1} parent=1 // pred_check_branch
      %40 = sbr.rel (0) target = $region21
    $region20: #{tpu_custom_call.1} parent=1 // pred_region
      %41 = dma.done [#allocation9], 32
    $region21: #{tpu_custom_call.1} parent=1 // pred_fallthru
      _
    %p43 = scmp.eq.s32.totalorder 0, 0
    // Predicated region
    $region22: #{tpu_custom_call.1} parent=1 // pred_check
      %p44 = pneg %p43
    $region23: #{tpu_custom_call.1} parent=1 // pred_check_branch
      %46 = sbr.rel (%p44) target = $region25
    $region24: #{tpu_custom_call.1} parent=1 // pred_region
      $region26: #{tpu_custom_call.1} parent=24
        #allocation11 [shape = 's32[1]{0}', space=sflag, size = 0x4, scoped, tag = 'scoped memory for tpu_custom_call.1']
        // Predicated region
        $region27: #{tpu_custom_call.1} parent=26 // pred_check
          _
        $region28: #{tpu_custom_call.1} parent=26 // pred_check_branch
          %48 = sbr.rel target = $region30
        $region29: #{tpu_custom_call.1} parent=26 // pred_region
          %49 = sst [smem:[#allocation14]] [#allocation13]
          %50 = sst [smem:[#allocation15]] [#allocation12]
        $region30: #{tpu_custom_call.1} parent=26 // pred_fallthru
          _
        %52 = shalt.err (0)
        %s54 = sshll.u32 [#allocation2], 4
        %s55 = int_to_ptr.vmem [resolvable:$true] %s54
        %57 = dma.hbm_to_vmem [thread:$0]  %s3, 256, %s55, [#allocation11]
        %s58 = smul.u32 4, 4
        %s59 = smul.u32 %s58, 1
        %s60 = sshll.u32 %s59, 4
        %61 = dma.done [#allocation11], %s60
      %v62 = vld [vmem:[#allocation8] sm:$0x3]
      %vm63 = vcmask 254976
      %64 = vst.msk [vmem:[#allocation3] sm:$0x3] %vm63, %v62
      %v65 = vld [vmem:[%s2] sm:$0x3]
      %66 = vst.msk [vmem:[#allocation4] sm:$0x3] %vm63, %v65
    $region25: #{tpu_custom_call.1} parent=1 // pred_fallthru
      _
    %v67 = vld [vmem:[#allocation3] sm:$0x3]
    %v68 = vld [vmem:[#allocation4] sm:$0x3]
    %v69 = vpack.c.bf16 %v67, %v67
    %v70 = vld [vmem:[#allocation2] sm:$0xf]
    %v71 = vld [vmem:[#allocation2 + $0x4] sm:$0xf]
    %v72 = vld [vmem:[#allocation2 + $0x8] sm:$0xf]
    %v73 = vld [vmem:[#allocation2 + $0xc] sm:$0xf]
    %v78 = vunpack.c.l.b16 %v70
    %v79 = vunpack.c.l.b16 %v71
    %v80 = vunpack.c.l.b16 %v72
    %v81 = vunpack.c.l.b16 %v73
    %v82 = vpack.c.b16 %v79, %v78
    %v83 = vpack.c.b16 %v81, %v80
    %vm86 = vcmask 261120
    %v88 = vsel %vm86, %v69, 0
    %90 = vmatprep.subr.bf16.mxu0 0
    %91 = vmatpush1.bf16.msra.mxu0 0
    %92 = vmatprep.subr.bf16.mxu0 0
    %93 = vmatpush1.bf16.msra.mxu0 0
    %94 = vmatprep.subr.bf16.mxu0 0
    %95 = vmatpush1.bf16.msra.mxu0 0
    %96 = vmatprep.subr.bf16.mxu0 0
    %97 = vmatpush1.bf16.msra.mxu0 0
    %98 = vmatprep.subr.bf16.mxu0 0
    %99 = vmatpush1.bf16.msra.mxu0 0
    %100 = vmatprep.subr.bf16.mxu0 0
    %101 = vmatpush1.bf16.msra.mxu0 0
    %102 = vmatprep.subr.bf16.mxu0 0
    %103 = vmatpush1.bf16.msra.mxu0 %v83
    %104 = vmatprep.subr.bf16.mxu0 0
    %105 = vmatpush1.bf16.msra.mxu0 %v82
    %106 = vmatprep.subr.bf16.mxu0 0
    %107 = vmatpush2.bf16.msra.mxu0 0
    %108 = vmatprep.subr.bf16.mxu0 0
    %109 = vmatpush2.bf16.msra.mxu0 0
    %110 = vmatprep.subr.bf16.mxu0 0
    %111 = vmatpush2.bf16.msra.mxu0 0
    %112 = vmatprep.subr.bf16.mxu0 0
    %113 = vmatpush2.bf16.msra.mxu0 0
    %114 = vmatprep.subr.bf16.mxu0 0
    %115 = vmatpush2.bf16.msra.mxu0 0
    %116 = vmatprep.subr.bf16.mxu0 0
    %117 = vmatpush2.bf16.msra.mxu0 0
    %118 = vmatprep.subr.bf16.mxu0 0
    %119 = vmatpush2.bf16.msra.mxu0 0
    %120 = vmatprep.subr.bf16.mxu0 0
    %121 = vmatpush2.bf16.msra.mxu0 0
    %122 = vmatprep.mubr.bf16.mxu0 0
    %123 = vmatmul.mubr.bf16.gmra.mxu0 %v88
    %v124 = vpop.f32.mrf.mxu0
    %v125 = vadd.f32 0.0, %v124
    %v126 = vpop.f32.mrf.mxu0
    %v127 = vpop.f32.mrf.mxu0
    %v128 = vpop.f32.mrf.mxu0
    %129 = vdwg.mxu0
    %v130 = vld [vmem:[#allocation5] sm:$0x1]
    %v131 = vunpack.c.l.bf16 %v130
    %v132 = vadd.f32 %v131, %v125
    %v133 = vxor.u32 %v132, 2147483648
    %v134 = vmul.f32 %v133, 1.442695
    %v135 = vpow.pop %v134
    %v136 = vadd.f32 %v135, 1.0
    %v137 = vrcp.pop %v136
    %v138 = vmul.f32 1.0, %v137
    %v139 = vtanh.pop %v132
    %v142 = vunpack.c.l.s4 1983009808
    %v143 = vunpack.c.0.s8 %v142
    %v144 = vlaneseq
    %v145 = vshrl.u32 %v144, 7
    %v146 = vsub.s32 %v143, %v145
    %v147 = vrot.slane %v68, %v146
    %148 = vrot.lane.b32.xlu0 %v147, 32
    %v149 = vpop.permute.xlu0 %148
    %v151 = vmul.f32 %v138, %v149
    %153 = vrot.lane.b32.xlu0 %v139, 64
    %v154 = vpop.permute.xlu0 %153
    %v156 = vmul.f32 %v138, %v154
    %158 = vrot.lane.b32.xlu0 %v156, 32
    %v159 = vpop.permute.xlu0 %158
    %v161 = vadd.f32 %v151, %v159
    %v162 = vtanh.pop %v161
    %164 = vrot.lane.b32.xlu0 %v162, 64
    %v165 = vpop.permute.xlu0 %164
    %v167 = vmul.f32 %v138, %v165
    %v170 = vunpack.c.l.s4 1983009808
    %v171 = vunpack.c.0.s8 %v170
    %v172 = vlaneseq
    %v173 = vshrl.u32 %v172, 7
    %v174 = vsub.s32 %v171, %v173
    %v175 = vrot.slane %v161, %v174
    %176 = vrot.lane.b32.xlu0 %v175, 96
    %v177 = vpop.permute.xlu0 %176
    %vm179 = vcmask 254976
    %180 = vst.msk [vmem:[#allocation4] sm:$0x3] %vm179, %v177
    %v183 = vunpack.c.l.s4 1983009808
    %v184 = vunpack.c.0.s8 %v183
    %v185 = vlaneseq
    %v186 = vshrl.u32 %v185, 7
    %v187 = vsub.s32 %v184, %v186
    %v188 = vrot.slane %v167, %v187
    %189 = vrot.lane.b32.xlu0 %v188, 32
    %v190 = vpop.permute.xlu0 %189
    %192 = vst.msk [vmem:[#allocation3] sm:$0x3] %vm179, %v190
    %v194 = vunpack.c.l.s4 1966171168
    %v195 = vunpack.c.0.s8 %v194
    %v196 = vlaneseq
    %v197 = vshrl.u32 %v196, 7
    %v198 = vsub.s32 %v195, %v197
    %v199 = vrot.slane %v167, %v198
    %v200 = vcombine.high %v199, %v199
    %v203 = vpack.c.bf16 %v199, %v199
    %v204 = vpack.c.bf16 %v200, %v200
    %v207 = vunpack.c.l.b16 %v203
    %v208 = vunpack.c.l.b16 %v204
    %v209 = vpack.c.b16 %v207, %v207
    %v210 = vpack.c.b16 %v208, %v208
    %211 = vrot.lane.b32.xlu0 %v209, 32
    %v212 = vpop.permute.xlu0 %211
    %213 = vrot.lane.b32.xlu0 %v210, 32
    %v214 = vpop.permute.xlu0 %213
    %vm217 = vcmask 253952
    %vm218 = vsmask.f32 256
    %vm219 = vmand %vm217, %vm218
    %v220 = vld [vmem:[#allocation10] sm:$0x1]
    %v221 = vsel %vm219, %v212, %v220
    %222 = vst [vmem:[#allocation10] sm:$0x1] %v221
    %v223 = vld [vmem:[#allocation10 + $0x4] sm:$0x1]
    %v224 = vsel %vm219, %v214, %v223
    %225 = vst [vmem:[#allocation10 + $0x4] sm:$0x1] %v224
    %v226 = vld [vmem:[#allocation3] sm:$0x3]
    %v227 = vld [vmem:[#allocation4] sm:$0x3]
    %v228 = vpack.c.bf16 %v226, %v226
    %v229 = vld [vmem:[#allocation2] sm:$0xf]
    %v230 = vld [vmem:[#allocation2 + $0x4] sm:$0xf]
    %v231 = vld [vmem:[#allocation2 + $0x8] sm:$0xf]
    %v232 = vld [vmem:[#allocation2 + $0xc] sm:$0xf]
    %v237 = vunpack.c.l.b16 %v229
    %v238 = vunpack.c.l.b16 %v230
    %v239 = vunpack.c.l.b16 %v231
    %v240 = vunpack.c.l.b16 %v232
    %v241 = vpack.c.b16 %v238, %v237
    %v242 = vpack.c.b16 %v240, %v239
    %v246 = vsel %vm86, %v228, 0
    %248 = vmatprep.subr.bf16.mxu0 0
    %249 = vmatpush1.bf16.msra.mxu0 0
    %250 = vmatprep.subr.bf16.mxu0 0
    %251 = vmatpush1.bf16.msra.mxu0 0
    %252 = vmatprep.subr.bf16.mxu0 0
    %253 = vmatpush1.bf16.msra.mxu0 0
    %254 = vmatprep.subr.bf16.mxu0 0
    %255 = vmatpush1.bf16.msra.mxu0 0
    %256 = vmatprep.subr.bf16.mxu0 0
    %257 = vmatpush1.bf16.msra.mxu0 0
    %258 = vmatprep.subr.bf16.mxu0 0
    %259 = vmatpush1.bf16.msra.mxu0 0
    %260 = vmatprep.subr.bf16.mxu0 0
    %261 = vmatpush1.bf16.msra.mxu0 %v242
    %262 = vmatprep.subr.bf16.mxu0 0
    %263 = vmatpush1.bf16.msra.mxu0 %v241
    %264 = vmatprep.subr.bf16.mxu0 0
    %265 = vmatpush2.bf16.msra.mxu0 0
    %266 = vmatprep.subr.bf16.mxu0 0
    %267 = vmatpush2.bf16.msra.mxu0 0
    %268 = vmatprep.subr.bf16.mxu0 0
    %269 = vmatpush2.bf16.msra.mxu0 0
    %270 = vmatprep.subr.bf16.mxu0 0
    %271 = vmatpush2.bf16.msra.mxu0 0
    %272 = vmatprep.subr.bf16.mxu0 0
    %273 = vmatpush2.bf16.msra.mxu0 0
    %274 = vmatprep.subr.bf16.mxu0 0
    %275 = vmatpush2.bf16.msra.mxu0 0
    %276 = vmatprep.subr.bf16.mxu0 0
    %277 = vmatpush2.bf16.msra.mxu0 0
    %278 = vmatprep.subr.bf16.mxu0 0
    %279 = vmatpush2.bf16.msra.mxu0 0
    %280 = vmatprep.mubr.bf16.mxu0 0
    %281 = vmatmul.mubr.bf16.gmra.mxu0 %v246
    %v282 = vpop.f32.mrf.mxu0
    %v283 = vadd.f32 0.0, %v282
    %v284 = vpop.f32.mrf.mxu0
    %v285 = vpop.f32.mrf.mxu0
    %v286 = vpop.f32.mrf.mxu0
    %287 = vdwg.mxu0
    %s288 = scalar_lea.vmem [#allocation5], 1
    %v289 = vld [vmem:[%s288] sm:$0x1]
    %v290 = vunpack.c.l.bf16 %v289
    %v291 = vadd.f32 %v290, %v283
    %v292 = vxor.u32 %v291, 2147483648
    %v293 = vmul.f32 %v292, 1.442695
    %v294 = vpow.pop %v293
    %v295 = vadd.f32 %v294, 1.0
    %v296 = vrcp.pop %v295
    %v297 = vmul.f32 1.0, %v296
    %v298 = vtanh.pop %v291
    %v301 = vunpack.c.l.s4 1983009808
    %v302 = vunpack.c.0.s8 %v301
    %v303 = vlaneseq
    %v304 = vshrl.u32 %v303, 7
    %v305 = vsub.s32 %v302, %v304
    %v306 = vrot.slane %v227, %v305
    %307 = vrot.lane.b32.xlu0 %v306, 32
    %v308 = vpop.permute.xlu0 %307
    %v310 = vmul.f32 %v297, %v308
    %312 = vrot.lane.b32.xlu0 %v298, 64
    %v313 = vpop.permute.xlu0 %312
    %v315 = vmul.f32 %v297, %v313
    %317 = vrot.lane.b32.xlu0 %v315, 32
    %v318 = vpop.permute.xlu0 %317
    %v320 = vadd.f32 %v310, %v318
    %v321 = vtanh.pop %v320
    %323 = vrot.lane.b32.xlu0 %v321, 64
    %v324 = vpop.permute.xlu0 %323
    %v326 = vmul.f32 %v297, %v324
    %v329 = vunpack.c.l.s4 1983009808
    %v330 = vunpack.c.0.s8 %v329
    %v331 = vlaneseq
    %v332 = vshrl.u32 %v331, 7
    %v333 = vsub.s32 %v330, %v332
    %v334 = vrot.slane %v320, %v333
    %335 = vrot.lane.b32.xlu0 %v334, 96
    %v336 = vpop.permute.xlu0 %335
    %338 = vst.msk [vmem:[#allocation4] sm:$0x3] %vm179, %v336
    %v341 = vunpack.c.l.s4 1983009808
    %v342 = vunpack.c.0.s8 %v341
    %v343 = vlaneseq
    %v344 = vshrl.u32 %v343, 7
    %v345 = vsub.s32 %v342, %v344
    %v346 = vrot.slane %v326, %v345
    %347 = vrot.lane.b32.xlu0 %v346, 32
    %v348 = vpop.permute.xlu0 %347
    %350 = vst.msk [vmem:[#allocation3] sm:$0x3] %vm179, %v348
    %v352 = vunpack.c.l.s4 1966171168
    %v353 = vunpack.c.0.s8 %v352
    %v354 = vlaneseq
    %v355 = vshrl.u32 %v354, 7
    %v356 = vsub.s32 %v353, %v355
    %v357 = vrot.slane %v326, %v356
    %v358 = vcombine.high %v357, %v357
    %v361 = vpack.c.bf16 %v357, %v357
    %v362 = vpack.c.bf16 %v358, %v358
    %v365 = vunpack.c.l.b16 %v361
    %v366 = vunpack.c.l.b16 %v362
    %v367 = vpack.c.b16 %v365, %v365
    %v368 = vpack.c.b16 %v366, %v366
    %v370 = vshll.u32 %v367, 16
    %v373 = vshll.u32 %v368, 16
    %375 = vrot.lane.b32.xlu0 %v370, 32
    %v376 = vpop.permute.xlu0 %375
    %377 = vrot.lane.b32.xlu0 %v373, 32
    %v378 = vpop.permute.xlu0 %377
    %vm381 = vsmask.f32 7938
    %vm382 = vmand %vm217, %vm381
    %v383 = vld [vmem:[#allocation10] sm:$0x1]
    %v384 = vsel %vm382, %v376, %v383
    %385 = vst [vmem:[#allocation10] sm:$0x1] %v384
    %v386 = vld [vmem:[#allocation10 + $0x4] sm:$0x1]
    %v387 = vsel %vm382, %v378, %v386
    %388 = vst [vmem:[#allocation10 + $0x4] sm:$0x1] %v387
    %v389 = vld [vmem:[#allocation3] sm:$0x3]
    %v390 = vld [vmem:[#allocation4] sm:$0x3]
    %v391 = vpack.c.bf16 %v389, %v389
    %v392 = vld [vmem:[#allocation2] sm:$0xf]
    %v393 = vld [vmem:[#allocation2 + $0x4] sm:$0xf]
    %v394 = vld [vmem:[#allocation2 + $0x8] sm:$0xf]
    %v395 = vld [vmem:[#allocation2 + $0xc] sm:$0xf]
    %v400 = vunpack.c.l.b16 %v392
    %v401 = vunpack.c.l.b16 %v393
    %v402 = vunpack.c.l.b16 %v394
    %v403 = vunpack.c.l.b16 %v395
    %v404 = vpack.c.b16 %v401, %v400
    %v405 = vpack.c.b16 %v403, %v402
    %v409 = vsel %vm86, %v391, 0
    %411 = vmatprep.subr.bf16.mxu0 0
    %412 = vmatpush1.bf16.msra.mxu0 0
    %413 = vmatprep.subr.bf16.mxu0 0
    %414 = vmatpush1.bf16.msra.mxu0 0
    %415 = vmatprep.subr.bf16.mxu0 0
    %416 = vmatpush1.bf16.msra.mxu0 0
    %417 = vmatprep.subr.bf16.mxu0 0
    %418 = vmatpush1.bf16.msra.mxu0 0
    %419 = vmatprep.subr.bf16.mxu0 0
    %420 = vmatpush1.bf16.msra.mxu0 0
    %421 = vmatprep.subr.bf16.mxu0 0
    %422 = vmatpush1.bf16.msra.mxu0 0
    %423 = vmatprep.subr.bf16.mxu0 0
    %424 = vmatpush1.bf16.msra.mxu0 %v405
    %425 = vmatprep.subr.bf16.mxu0 0
    %426 = vmatpush1.bf16.msra.mxu0 %v404
    %427 = vmatprep.subr.bf16.mxu0 0
    %428 = vmatpush2.bf16.msra.mxu0 0
    %429 = vmatprep.subr.bf16.mxu0 0
    %430 = vmatpush2.bf16.msra.mxu0 0
    %431 = vmatprep.subr.bf16.mxu0 0
    %432 = vmatpush2.bf16.msra.mxu0 0
    %433 = vmatprep.subr.bf16.mxu0 0
    %434 = vmatpush2.bf16.msra.mxu0 0
    %435 = vmatprep.subr.bf16.mxu0 0
    %436 = vmatpush2.bf16.msra.mxu0 0
    %437 = vmatprep.subr.bf16.mxu0 0
    %438 = vmatpush2.bf16.msra.mxu0 0
    %439 = vmatprep.subr.bf16.mxu0 0
    %440 = vmatpush2.bf16.msra.mxu0 0
    %441 = vmatprep.subr.bf16.mxu0 0
    %442 = vmatpush2.bf16.msra.mxu0 0
    %443 = vmatprep.mubr.bf16.mxu0 0
    %444 = vmatmul.mubr.bf16.gmra.mxu0 %v409
    %v445 = vpop.f32.mrf.mxu0
    %v446 = vadd.f32 0.0, %v445
    %v447 = vpop.f32.mrf.mxu0
    %v448 = vpop.f32.mrf.mxu0
    %v449 = vpop.f32.mrf.mxu0
    %450 = vdwg.mxu0
    %s451 = scalar_lea.vmem [#allocation5], 2
    %v452 = vld [vmem:[%s451] sm:$0x1]
    %v453 = vunpack.c.l.bf16 %v452
    %v454 = vadd.f32 %v453, %v446
    %v455 = vxor.u32 %v454, 2147483648
    %v456 = vmul.f32 %v455, 1.442695
    %v457 = vpow.pop %v456
    %v458 = vadd.f32 %v457, 1.0
    %v459 = vrcp.pop %v458
    %v460 = vmul.f32 1.0, %v459
    %v461 = vtanh.pop %v454
    %v464 = vunpack.c.l.s4 1983009808
    %v465 = vunpack.c.0.s8 %v464
    %v466 = vlaneseq
    %v467 = vshrl.u32 %v466, 7
    %v468 = vsub.s32 %v465, %v467
    %v469 = vrot.slane %v390, %v468
    %470 = vrot.lane.b32.xlu0 %v469, 32
    %v471 = vpop.permute.xlu0 %470
    %v473 = vmul.f32 %v460, %v471
    %475 = vrot.lane.b32.xlu0 %v461, 64
    %v476 = vpop.permute.xlu0 %475
    %v478 = vmul.f32 %v460, %v476
    %480 = vrot.lane.b32.xlu0 %v478, 32
    %v481 = vpop.permute.xlu0 %480
    %v483 = vadd.f32 %v473, %v481
    %v484 = vtanh.pop %v483
    %486 = vrot.lane.b32.xlu0 %v484, 64
    %v487 = vpop.permute.xlu0 %486
    %v489 = vmul.f32 %v460, %v487
    %v492 = vunpack.c.l.s4 1983009808
    %v493 = vunpack.c.0.s8 %v492
    %v494 = vlaneseq
    %v495 = vshrl.u32 %v494, 7
    %v496 = vsub.s32 %v493, %v495
    %v497 = vrot.slane %v483, %v496
    %498 = vrot.lane.b32.xlu0 %v497, 96
    %v499 = vpop.permute.xlu0 %498
    %501 = vst.msk [vmem:[#allocation4] sm:$0x3] %vm179, %v499
    %v504 = vunpack.c.l.s4 1983009808
    %v505 = vunpack.c.0.s8 %v504
    %v506 = vlaneseq
    %v507 = vshrl.u32 %v506, 7
    %v508 = vsub.s32 %v505, %v507
    %v509 = vrot.slane %v489, %v508
    %510 = vrot.lane.b32.xlu0 %v509, 32
    %v511 = vpop.permute.xlu0 %510
    %513 = vst.msk [vmem:[#allocation3] sm:$0x3] %vm179, %v511
    %v515 = vunpack.c.l.s4 1966171168
    %v516 = vunpack.c.0.s8 %v515
    %v517 = vlaneseq
    %v518 = vshrl.u32 %v517, 7
    %v519 = vsub.s32 %v516, %v518
    %v520 = vrot.slane %v489, %v519
    %v521 = vcombine.high %v520, %v520
    %v524 = vpack.c.bf16 %v520, %v520
    %v525 = vpack.c.bf16 %v521, %v521
    %v528 = vunpack.c.l.b16 %v524
    %v529 = vunpack.c.l.b16 %v525
    %v530 = vpack.c.b16 %v528, %v528
    %v531 = vpack.c.b16 %v529, %v529
    %v532 = vrot.slane %v530, 7
    %v533 = vrot.slane %v531, 7
    %534 = vrot.lane.b32.xlu0 %v532, 32
    %v535 = vpop.permute.xlu0 %534
    %536 = vrot.lane.b32.xlu0 %v533, 32
    %v537 = vpop.permute.xlu0 %536
    %vm540 = vcmask 254977
    %vm541 = vsmask.f32 1280
    %vm542 = vmand %vm540, %vm541
    %v543 = vld [vmem:[#allocation10] sm:$0x2]
    %v544 = vsel %vm542, %v535, %v543
    %545 = vst [vmem:[#allocation10] sm:$0x2] %v544
    %v546 = vld [vmem:[#allocation10 + $0x4] sm:$0x2]
    %v547 = vsel %vm542, %v537, %v546
    %548 = vst [vmem:[#allocation10 + $0x4] sm:$0x2] %v547
    %v549 = vld [vmem:[#allocation3] sm:$0x3]
    %v550 = vld [vmem:[#allocation4] sm:$0x3]
    %v551 = vpack.c.bf16 %v549, %v549
    %v552 = vld [vmem:[#allocation2] sm:$0xf]
    %v553 = vld [vmem:[#allocation2 + $0x4] sm:$0xf]
    %v554 = vld [vmem:[#allocation2 + $0x8] sm:$0xf]
    %v555 = vld [vmem:[#allocation2 + $0xc] sm:$0xf]
    %v560 = vunpack.c.l.b16 %v552
    %v561 = vunpack.c.l.b16 %v553
    %v562 = vunpack.c.l.b16 %v554
    %v563 = vunpack.c.l.b16 %v555
    %v564 = vpack.c.b16 %v561, %v560
    %v565 = vpack.c.b16 %v563, %v562
    %v569 = vsel %vm86, %v551, 0
    %571 = vmatprep.subr.bf16.mxu0 0
    %572 = vmatpush1.bf16.msra.mxu0 0
    %573 = vmatprep.subr.bf16.mxu0 0
    %574 = vmatpush1.bf16.msra.mxu0 0
    %575 = vmatprep.subr.bf16.mxu0 0
    %576 = vmatpush1.bf16.msra.mxu0 0
    %577 = vmatprep.subr.bf16.mxu0 0
    %578 = vmatpush1.bf16.msra.mxu0 0
    %579 = vmatprep.subr.bf16.mxu0 0
    %580 = vmatpush1.bf16.msra.mxu0 0
    %581 = vmatprep.subr.bf16.mxu0 0
    %582 = vmatpush1.bf16.msra.mxu0 0
    %583 = vmatprep.subr.bf16.mxu0 0
    %584 = vmatpush1.bf16.msra.mxu0 %v565
    %585 = vmatprep.subr.bf16.mxu0 0
    %586 = vmatpush1.bf16.msra.mxu0 %v564
    %587 = vmatprep.subr.bf16.mxu0 0
    %588 = vmatpush2.bf16.msra.mxu0 0
    %589 = vmatprep.subr.bf16.mxu0 0
    %590 = vmatpush2.bf16.msra.mxu0 0
    %591 = vmatprep.subr.bf16.mxu0 0
    %592 = vmatpush2.bf16.msra.mxu0 0
    %593 = vmatprep.subr.bf16.mxu0 0
    %594 = vmatpush2.bf16.msra.mxu0 0
    %595 = vmatprep.subr.bf16.mxu0 0
    %596 = vmatpush2.bf16.msra.mxu0 0
    %597 = vmatprep.subr.bf16.mxu0 0
    %598 = vmatpush2.bf16.msra.mxu0 0
    %599 = vmatprep.subr.bf16.mxu0 0
    %600 = vmatpush2.bf16.msra.mxu0 0
    %601 = vmatprep.subr.bf16.mxu0 0
    %602 = vmatpush2.bf16.msra.mxu0 0
    %603 = vmatprep.mubr.bf16.mxu0 0
    %604 = vmatmul.mubr.bf16.gmra.mxu0 %v569
    %v605 = vpop.f32.mrf.mxu0
    %v606 = vadd.f32 0.0, %v605
    %v607 = vpop.f32.mrf.mxu0
    %v608 = vpop.f32.mrf.mxu0
    %v609 = vpop.f32.mrf.mxu0
    %610 = vdwg.mxu0
    %s611 = scalar_lea.vmem [#allocation5], 3
    %v612 = vld [vmem:[%s611] sm:$0x1]
    %v613 = vunpack.c.l.bf16 %v612
    %v614 = vadd.f32 %v613, %v606
    %v615 = vxor.u32 %v614, 2147483648
    %v616 = vmul.f32 %v615, 1.442695
    %v617 = vpow.pop %v616
    %v618 = vadd.f32 %v617, 1.0
    %v619 = vrcp.pop %v618
    %v620 = vmul.f32 1.0, %v619
    %v621 = vtanh.pop %v614
    %v624 = vunpack.c.l.s4 1983009808
    %v625 = vunpack.c.0.s8 %v624
    %v626 = vlaneseq
    %v627 = vshrl.u32 %v626, 7
    %v628 = vsub.s32 %v625, %v627
    %v629 = vrot.slane %v550, %v628
    %630 = vrot.lane.b32.xlu0 %v629, 32
    %v631 = vpop.permute.xlu0 %630
    %v633 = vmul.f32 %v620, %v631
    %635 = vrot.lane.b32.xlu0 %v621, 64
    %v636 = vpop.permute.xlu0 %635
    %v638 = vmul.f32 %v620, %v636
    %640 = vrot.lane.b32.xlu0 %v638, 32
    %v641 = vpop.permute.xlu0 %640
    %v643 = vadd.f32 %v633, %v641
    %v644 = vtanh.pop %v643
    %646 = vrot.lane.b32.xlu0 %v644, 64
    %v647 = vpop.permute.xlu0 %646
    %v649 = vmul.f32 %v620, %v647
    %v652 = vunpack.c.l.s4 1983009808
    %v653 = vunpack.c.0.s8 %v652
    %v654 = vlaneseq
    %v655 = vshrl.u32 %v654, 7
    %v656 = vsub.s32 %v653, %v655
    %v657 = vrot.slane %v643, %v656
    %658 = vrot.lane.b32.xlu0 %v657, 96
    %v659 = vpop.permute.xlu0 %658
    %661 = vst.msk [vmem:[#allocation4] sm:$0x3] %vm179, %v659
    %v664 = vunpack.c.l.s4 1983009808
    %v665 = vunpack.c.0.s8 %v664
    %v666 = vlaneseq
    %v667 = vshrl.u32 %v666, 7
    %v668 = vsub.s32 %v665, %v667
    %v669 = vrot.slane %v649, %v668
    %670 = vrot.lane.b32.xlu0 %v669, 32
    %v671 = vpop.permute.xlu0 %670
    %673 = vst.msk [vmem:[#allocation3] sm:$0x3] %vm179, %v671
    %v675 = vunpack.c.l.s4 1966171168
    %v676 = vunpack.c.0.s8 %v675
    %v677 = vlaneseq
    %v678 = vshrl.u32 %v677, 7
    %v679 = vsub.s32 %v676, %v678
    %v680 = vrot.slane %v649, %v679
    %v681 = vcombine.high %v680, %v680
    %v684 = vpack.c.bf16 %v680, %v680
    %v685 = vpack.c.bf16 %v681, %v681
    %v688 = vunpack.c.l.b16 %v684
    %v689 = vunpack.c.l.b16 %v685
    %v690 = vpack.c.b16 %v688, %v688
    %v691 = vpack.c.b16 %v689, %v689
    %v693 = vshll.u32 %v690, 16
    %v695 = vrot.slane %v693, 7
    %v697 = vshll.u32 %v691, 16
    %v699 = vrot.slane %v697, 7
    %700 = vrot.lane.b32.xlu0 %v695, 32
    %v701 = vpop.permute.xlu0 %700
    %702 = vrot.lane.b32.xlu0 %v699, 32
    %v703 = vpop.permute.xlu0 %702
    %vm706 = vsmask.f32 7942
    %vm707 = vmand %vm540, %vm706
    %v708 = vld [vmem:[#allocation10] sm:$0x2]
    %v709 = vsel %vm707, %v701, %v708
    %710 = vst [vmem:[#allocation10] sm:$0x2] %v709
    %v711 = vld [vmem:[#allocation10 + $0x4] sm:$0x2]
    %v712 = vsel %vm707, %v703, %v711
    %713 = vst [vmem:[#allocation10 + $0x4] sm:$0x2] %v712
    %v714 = vld [vmem:[#allocation3] sm:$0x3]
    %v715 = vld [vmem:[#allocation4] sm:$0x3]
    %v716 = vpack.c.bf16 %v714, %v714
    %v717 = vld [vmem:[#allocation2] sm:$0xf]
    %v718 = vld [vmem:[#allocation2 + $0x4] sm:$0xf]
    %v719 = vld [vmem:[#allocation2 + $0x8] sm:$0xf]
    %v720 = vld [vmem:[#allocation2 + $0xc] sm:$0xf]
    %v725 = vunpack.c.l.b16 %v717
    %v726 = vunpack.c.l.b16 %v718
    %v727 = vunpack.c.l.b16 %v719
    %v728 = vunpack.c.l.b16 %v720
    %v729 = vpack.c.b16 %v726, %v725
    %v730 = vpack.c.b16 %v728, %v727
    %v734 = vsel %vm86, %v716, 0
    %736 = vmatprep.subr.bf16.mxu0 0
    %737 = vmatpush1.bf16.msra.mxu0 0
    %738 = vmatprep.subr.bf16.mxu0 0
    %739 = vmatpush1.bf16.msra.mxu0 0
    %740 = vmatprep.subr.bf16.mxu0 0
    %741 = vmatpush1.bf16.msra.mxu0 0
    %742 = vmatprep.subr.bf16.mxu0 0
    %743 = vmatpush1.bf16.msra.mxu0 0
    %744 = vmatprep.subr.bf16.mxu0 0
    %745 = vmatpush1.bf16.msra.mxu0 0
    %746 = vmatprep.subr.bf16.mxu0 0
    %747 = vmatpush1.bf16.msra.mxu0 0
    %748 = vmatprep.subr.bf16.mxu0 0
    %749 = vmatpush1.bf16.msra.mxu0 %v730
    %750 = vmatprep.subr.bf16.mxu0 0
    %751 = vmatpush1.bf16.msra.mxu0 %v729
    %752 = vmatprep.subr.bf16.mxu0 0
    %753 = vmatpush2.bf16.msra.mxu0 0
    %754 = vmatprep.subr.bf16.mxu0 0
    %755 = vmatpush2.bf16.msra.mxu0 0
    %756 = vmatprep.subr.bf16.mxu0 0
    %757 = vmatpush2.bf16.msra.mxu0 0
    %758 = vmatprep.subr.bf16.mxu0 0
    %759 = vmatpush2.bf16.msra.mxu0 0
    %760 = vmatprep.subr.bf16.mxu0 0
    %761 = vmatpush2.bf16.msra.mxu0 0
    %762 = vmatprep.subr.bf16.mxu0 0
    %763 = vmatpush2.bf16.msra.mxu0 0
    %764 = vmatprep.subr.bf16.mxu0 0
    %765 = vmatpush2.bf16.msra.mxu0 0
    %766 = vmatprep.subr.bf16.mxu0 0
    %767 = vmatpush2.bf16.msra.mxu0 0
    %768 = vmatprep.mubr.bf16.mxu0 0
    %769 = vmatmul.mubr.bf16.gmra.mxu0 %v734
    %v770 = vpop.f32.mrf.mxu0
    %v771 = vadd.f32 0.0, %v770
    %v772 = vpop.f32.mrf.mxu0
    %v773 = vpop.f32.mrf.mxu0
    %v774 = vpop.f32.mrf.mxu0
    %775 = vdwg.mxu0
    %s776 = scalar_lea.vmem [#allocation5], 4
    %v777 = vld [vmem:[%s776] sm:$0x1]
    %v778 = vunpack.c.l.bf16 %v777
    %v779 = vadd.f32 %v778, %v771
    %v780 = vxor.u32 %v779, 2147483648
    %v781 = vmul.f32 %v780, 1.442695
    %v782 = vpow.pop %v781
    %v783 = vadd.f32 %v782, 1.0
    %v784 = vrcp.pop %v783
    %v785 = vmul.f32 1.0, %v784
    %v786 = vtanh.pop %v779
    %v789 = vunpack.c.l.s4 1983009808
    %v790 = vunpack.c.0.s8 %v789
    %v791 = vlaneseq
    %v792 = vshrl.u32 %v791, 7
    %v793 = vsub.s32 %v790, %v792
    %v794 = vrot.slane %v715, %v793
    %795 = vrot.lane.b32.xlu0 %v794, 32
    %v796 = vpop.permute.xlu0 %795
    %v798 = vmul.f32 %v785, %v796
    %800 = vrot.lane.b32.xlu0 %v786, 64
    %v801 = vpop.permute.xlu0 %800
    %v803 = vmul.f32 %v785, %v801
    %805 = vrot.lane.b32.xlu0 %v803, 32
    %v806 = vpop.permute.xlu0 %805
    %v808 = vadd.f32 %v798, %v806
    %v809 = vtanh.pop %v808
    %811 = vrot.lane.b32.xlu0 %v809, 64
    %v812 = vpop.permute.xlu0 %811
    %v814 = vmul.f32 %v785, %v812
    %v817 = vunpack.c.l.s4 1983009808
    %v818 = vunpack.c.0.s8 %v817
    %v819 = vlaneseq
    %v820 = vshrl.u32 %v819, 7
    %v821 = vsub.s32 %v818, %v820
    %v822 = vrot.slane %v808, %v821
    %823 = vrot.lane.b32.xlu0 %v822, 96
    %v824 = vpop.permute.xlu0 %823
    %826 = vst.msk [vmem:[#allocation4] sm:$0x3] %vm179, %v824
    %v829 = vunpack.c.l.s4 1983009808
    %v830 = vunpack.c.0.s8 %v829
    %v831 = vlaneseq
    %v832 = vshrl.u32 %v831, 7
    %v833 = vsub.s32 %v830, %v832
    %v834 = vrot.slane %v814, %v833
    %835 = vrot.lane.b32.xlu0 %v834, 32
    %v836 = vpop.permute.xlu0 %835
    %838 = vst.msk [vmem:[#allocation3] sm:$0x3] %vm179, %v836
    %v840 = vunpack.c.l.s4 1966171168
    %v841 = vunpack.c.0.s8 %v840
    %v842 = vlaneseq
    %v843 = vshrl.u32 %v842, 7
    %v844 = vsub.s32 %v841, %v843
    %v845 = vrot.slane %v814, %v844
    %v846 = vcombine.high %v845, %v845
    %v849 = vpack.c.bf16 %v845, %v845
    %v850 = vpack.c.bf16 %v846, %v846
    %v853 = vunpack.c.l.b16 %v849
    %v854 = vunpack.c.l.b16 %v850
    %v855 = vpack.c.b16 %v853, %v853
    %v856 = vpack.c.b16 %v854, %v854
    %v857 = vrot.slane %v855, 6
    %v858 = vrot.slane %v856, 6
    %859 = vrot.lane.b32.xlu0 %v857, 32
    %v860 = vpop.permute.xlu0 %859
    %861 = vrot.lane.b32.xlu0 %v858, 32
    %v862 = vpop.permute.xlu0 %861
    %vm865 = vcmask 256002
    %vm866 = vsmask.f32 2304
    %vm867 = vmand %vm865, %vm866
    %v868 = vld [vmem:[#allocation10] sm:$0x4]
    %v869 = vsel %vm867, %v860, %v868
    %870 = vst [vmem:[#allocation10] sm:$0x4] %v869
    %v871 = vld [vmem:[#allocation10 + $0x4] sm:$0x4]
    %v872 = vsel %vm867, %v862, %v871
    %873 = vst [vmem:[#allocation10 + $0x4] sm:$0x4] %v872
    %v874 = vld [vmem:[#allocation3] sm:$0x3]
    %v875 = vld [vmem:[#allocation4] sm:$0x3]
    %v876 = vpack.c.bf16 %v874, %v874
    %v877 = vld [vmem:[#allocation2] sm:$0xf]
    %v878 = vld [vmem:[#allocation2 + $0x4] sm:$0xf]
    %v879 = vld [vmem:[#allocation2 + $0x8] sm:$0xf]
    %v880 = vld [vmem:[#allocation2 + $0xc] sm:$0xf]
    %v885 = vunpack.c.l.b16 %v877
    %v886 = vunpack.c.l.b16 %v878
    %v887 = vunpack.c.l.b16 %v879
    %v888 = vunpack.c.l.b16 %v880
    %v889 = vpack.c.b16 %v886, %v885
    %v890 = vpack.c.b16 %v888, %v887
    %v894 = vsel %vm86, %v876, 0
    %896 = vmatprep.subr.bf16.mxu0 0
    %897 = vmatpush1.bf16.msra.mxu0 0
    %898 = vmatprep.subr.bf16.mxu0 0
    %899 = vmatpush1.bf16.msra.mxu0 0
    %900 = vmatprep.subr.bf16.mxu0 0
    %901 = vmatpush1.bf16.msra.mxu0 0
    %902 = vmatprep.subr.bf16.mxu0 0
    %903 = vmatpush1.bf16.msra.mxu0 0
    %904 = vmatprep.subr.bf16.mxu0 0
    %905 = vmatpush1.bf16.msra.mxu0 0
    %906 = vmatprep.subr.bf16.mxu0 0
    %907 = vmatpush1.bf16.msra.mxu0 0
    %908 = vmatprep.subr.bf16.mxu0 0
    %909 = vmatpush1.bf16.msra.mxu0 %v890
    %910 = vmatprep.subr.bf16.mxu0 0
    %911 = vmatpush1.bf16.msra.mxu0 %v889
    %912 = vmatprep.subr.bf16.mxu0 0
    %913 = vmatpush2.bf16.msra.mxu0 0
    %914 = vmatprep.subr.bf16.mxu0 0
    %915 = vmatpush2.bf16.msra.mxu0 0
    %916 = vmatprep.subr.bf16.mxu0 0
    %917 = vmatpush2.bf16.msra.mxu0 0
    %918 = vmatprep.subr.bf16.mxu0 0
    %919 = vmatpush2.bf16.msra.mxu0 0
    %920 = vmatprep.subr.bf16.mxu0 0
    %921 = vmatpush2.bf16.msra.mxu0 0
    %922 = vmatprep.subr.bf16.mxu0 0
    %923 = vmatpush2.bf16.msra.mxu0 0
    %924 = vmatprep.subr.bf16.mxu0 0
    %925 = vmatpush2.bf16.msra.mxu0 0
    %926 = vmatprep.subr.bf16.mxu0 0
    %927 = vmatpush2.bf16.msra.mxu0 0
    %928 = vmatprep.mubr.bf16.mxu0 0
    %929 = vmatmul.mubr.bf16.gmra.mxu0 %v894
    %v930 = vpop.f32.mrf.mxu0
    %v931 = vadd.f32 0.0, %v930
    %v932 = vpop.f32.mrf.mxu0
    %v933 = vpop.f32.mrf.mxu0
    %v934 = vpop.f32.mrf.mxu0
    %935 = vdwg.mxu0
    %s936 = scalar_lea.vmem [#allocation5], 5
    %v937 = vld [vmem:[%s936] sm:$0x1]
    %v938 = vunpack.c.l.bf16 %v937
    %v939 = vadd.f32 %v938, %v931
    %v940 = vxor.u32 %v939, 2147483648
    %v941 = vmul.f32 %v940, 1.442695
    %v942 = vpow.pop %v941
    %v943 = vadd.f32 %v942, 1.0
    %v944 = vrcp.pop %v943
    %v945 = vmul.f32 1.0, %v944
    %v946 = vtanh.pop %v939
    %v949 = vunpack.c.l.s4 1983009808
    %v950 = vunpack.c.0.s8 %v949
    %v951 = vlaneseq
    %v952 = vshrl.u32 %v951, 7
    %v953 = vsub.s32 %v950, %v952
    %v954 = vrot.slane %v875, %v953
    %955 = vrot.lane.b32.xlu0 %v954, 32
    %v956 = vpop.permute.xlu0 %955
    %v958 = vmul.f32 %v945, %v956
    %960 = vrot.lane.b32.xlu0 %v946, 64
    %v961 = vpop.permute.xlu0 %960
    %v963 = vmul.f32 %v945, %v961
    %965 = vrot.lane.b32.xlu0 %v963, 32
    %v966 = vpop.permute.xlu0 %965
    %v968 = vadd.f32 %v958, %v966
    %v969 = vtanh.pop %v968
    %971 = vrot.lane.b32.xlu0 %v969, 64
    %v972 = vpop.permute.xlu0 %971
    %v974 = vmul.f32 %v945, %v972
    %v977 = vunpack.c.l.s4 1983009808
    %v978 = vunpack.c.0.s8 %v977
    %v979 = vlaneseq
    %v980 = vshrl.u32 %v979, 7
    %v981 = vsub.s32 %v978, %v980
    %v982 = vrot.slane %v968, %v981
    %983 = vrot.lane.b32.xlu0 %v982, 96
    %v984 = vpop.permute.xlu0 %983
    %986 = vst.msk [vmem:[#allocation4] sm:$0x3] %vm179, %v984
    %v989 = vunpack.c.l.s4 1983009808
    %v990 = vunpack.c.0.s8 %v989
    %v991 = vlaneseq
    %v992 = vshrl.u32 %v991, 7
    %v993 = vsub.s32 %v990, %v992
    %v994 = vrot.slane %v974, %v993
    %995 = vrot.lane.b32.xlu0 %v994, 32
    %v996 = vpop.permute.xlu0 %995
    %998 = vst.msk [vmem:[#allocation3] sm:$0x3] %vm179, %v996
    %v1000 = vunpack.c.l.s4 1966171168
    %v1001 = vunpack.c.0.s8 %v1000
    %v1002 = vlaneseq
    %v1003 = vshrl.u32 %v1002, 7
    %v1004 = vsub.s32 %v1001, %v1003
    %v1005 = vrot.slane %v974, %v1004
    %v1006 = vcombine.high %v1005, %v1005
    %v1009 = vpack.c.bf16 %v1005, %v1005
    %v1010 = vpack.c.bf16 %v1006, %v1006
    %v1013 = vunpack.c.l.b16 %v1009
    %v1014 = vunpack.c.l.b16 %v1010
    %v1015 = vpack.c.b16 %v1013, %v1013
    %v1016 = vpack.c.b16 %v1014, %v1014
    %v1018 = vshll.u32 %v1015, 16
    %v1020 = vrot.slane %v1018, 6
    %v1022 = vshll.u32 %v1016, 16
    %v1024 = vrot.slane %v1022, 6
    %1025 = vrot.lane.b32.xlu0 %v1020, 32
    %v1026 = vpop.permute.xlu0 %1025
    %1027 = vrot.lane.b32.xlu0 %v1024, 32
    %v1028 = vpop.permute.xlu0 %1027
    %vm1031 = vsmask.f32 7946
    %vm1032 = vmand %vm865, %vm1031
    %v1033 = vld [vmem:[#allocation10] sm:$0x4]
    %v1034 = vsel %vm1032, %v1026, %v1033
    %1035 = vst [vmem:[#allocation10] sm:$0x4] %v1034
    %v1036 = vld [vmem:[#allocation10 + $0x4] sm:$0x4]
    %v1037 = vsel %vm1032, %v1028, %v1036
    %1038 = vst [vmem:[#allocation10 + $0x4] sm:$0x4] %v1037
    %v1039 = vld [vmem:[#allocation3] sm:$0x3]
    %v1040 = vld [vmem:[#allocation4] sm:$0x3]
    %v1041 = vpack.c.bf16 %v1039, %v1039
    %v1042 = vld [vmem:[#allocation2] sm:$0xf]
    %v1043 = vld [vmem:[#allocation2 + $0x4] sm:$0xf]
    %v1044 = vld [vmem:[#allocation2 + $0x8] sm:$0xf]
    %v1045 = vld [vmem:[#allocation2 + $0xc] sm:$0xf]
    %v1050 = vunpack.c.l.b16 %v1042
    %v1051 = vunpack.c.l.b16 %v1043
    %v1052 = vunpack.c.l.b16 %v1044
    %v1053 = vunpack.c.l.b16 %v1045
    %v1054 = vpack.c.b16 %v1051, %v1050
    %v1055 = vpack.c.b16 %v1053, %v1052
    %v1059 = vsel %vm86, %v1041, 0
    %1061 = vmatprep.subr.bf16.mxu0 0
    %1062 = vmatpush1.bf16.msra.mxu0 0
    %1063 = vmatprep.subr.bf16.mxu0 0
    %1064 = vmatpush1.bf16.msra.mxu0 0
    %1065 = vmatprep.subr.bf16.mxu0 0
    %1066 = vmatpush1.bf16.msra.mxu0 0
    %1067 = vmatprep.subr.bf16.mxu0 0
    %1068 = vmatpush1.bf16.msra.mxu0 0
    %1069 = vmatprep.subr.bf16.mxu0 0
    %1070 = vmatpush1.bf16.msra.mxu0 0
    %1071 = vmatprep.subr.bf16.mxu0 0
    %1072 = vmatpush1.bf16.msra.mxu0 0
    %1073 = vmatprep.subr.bf16.mxu0 0
    %1074 = vmatpush1.bf16.msra.mxu0 %v1055
    %1075 = vmatprep.subr.bf16.mxu0 0
    %1076 = vmatpush1.bf16.msra.mxu0 %v1054
    %1077 = vmatprep.subr.bf16.mxu0 0
    %1078 = vmatpush2.bf16.msra.mxu0 0
    %1079 = vmatprep.subr.bf16.mxu0 0
    %1080 = vmatpush2.bf16.msra.mxu0 0
    %1081 = vmatprep.subr.bf16.mxu0 0
    %1082 = vmatpush2.bf16.msra.mxu0 0
    %1083 = vmatprep.subr.bf16.mxu0 0
    %1084 = vmatpush2.bf16.msra.mxu0 0
    %1085 = vmatprep.subr.bf16.mxu0 0
    %1086 = vmatpush2.bf16.msra.mxu0 0
    %1087 = vmatprep.subr.bf16.mxu0 0
    %1088 = vmatpush2.bf16.msra.mxu0 0
    %1089 = vmatprep.subr.bf16.mxu0 0
    %1090 = vmatpush2.bf16.msra.mxu0 0
    %1091 = vmatprep.subr.bf16.mxu0 0
    %1092 = vmatpush2.bf16.msra.mxu0 0
    %1093 = vmatprep.mubr.bf16.mxu0 0
    %1094 = vmatmul.mubr.bf16.gmra.mxu0 %v1059
    %v1095 = vpop.f32.mrf.mxu0
    %v1096 = vadd.f32 0.0, %v1095
    %v1097 = vpop.f32.mrf.mxu0
    %v1098 = vpop.f32.mrf.mxu0
    %v1099 = vpop.f32.mrf.mxu0
    %1100 = vdwg.mxu0
    %s1101 = scalar_lea.vmem [#allocation5], 6
    %v1102 = vld [vmem:[%s1101] sm:$0x1]
    %v1103 = vunpack.c.l.bf16 %v1102
    %v1104 = vadd.f32 %v1103, %v1096
    %v1105 = vxor.u32 %v1104, 2147483648
    %v1106 = vmul.f32 %v1105, 1.442695
    %v1107 = vpow.pop %v1106
    %v1108 = vadd.f32 %v1107, 1.0
    %v1109 = vrcp.pop %v1108
    %v1110 = vmul.f32 1.0, %v1109
    %v1111 = vtanh.pop %v1104
    %v1114 = vunpack.c.l.s4 1983009808
    %v1115 = vunpack.c.0.s8 %v1114
    %v1116 = vlaneseq
    %v1117 = vshrl.u32 %v1116, 7
    %v1118 = vsub.s32 %v1115, %v1117
    %v1119 = vrot.slane %v1040, %v1118
    %1120 = vrot.lane.b32.xlu0 %v1119, 32
    %v1121 = vpop.permute.xlu0 %1120
    %v1123 = vmul.f32 %v1110, %v1121
    %1125 = vrot.lane.b32.xlu0 %v1111, 64
    %v1126 = vpop.permute.xlu0 %1125
    %v1128 = vmul.f32 %v1110, %v1126
    %1130 = vrot.lane.b32.xlu0 %v1128, 32
    %v1131 = vpop.permute.xlu0 %1130
    %v1133 = vadd.f32 %v1123, %v1131
    %v1134 = vtanh.pop %v1133
    %1136 = vrot.lane.b32.xlu0 %v1134, 64
    %v1137 = vpop.permute.xlu0 %1136
    %v1139 = vmul.f32 %v1110, %v1137
    %v1142 = vunpack.c.l.s4 1983009808
    %v1143 = vunpack.c.0.s8 %v1142
    %v1144 = vlaneseq
    %v1145 = vshrl.u32 %v1144, 7
    %v1146 = vsub.s32 %v1143, %v1145
    %v1147 = vrot.slane %v1133, %v1146
    %1148 = vrot.lane.b32.xlu0 %v1147, 96
    %v1149 = vpop.permute.xlu0 %1148
    %1151 = vst.msk [vmem:[#allocation4] sm:$0x3] %vm179, %v1149
    %v1154 = vunpack.c.l.s4 1983009808
    %v1155 = vunpack.c.0.s8 %v1154
    %v1156 = vlaneseq
    %v1157 = vshrl.u32 %v1156, 7
    %v1158 = vsub.s32 %v1155, %v1157
    %v1159 = vrot.slane %v1139, %v1158
    %1160 = vrot.lane.b32.xlu0 %v1159, 32
    %v1161 = vpop.permute.xlu0 %1160
    %1163 = vst.msk [vmem:[#allocation3] sm:$0x3] %vm179, %v1161
    %v1165 = vunpack.c.l.s4 1966171168
    %v1166 = vunpack.c.0.s8 %v1165
    %v1167 = vlaneseq
    %v1168 = vshrl.u32 %v1167, 7
    %v1169 = vsub.s32 %v1166, %v1168
    %v1170 = vrot.slane %v1139, %v1169
    %v1171 = vcombine.high %v1170, %v1170
    %v1174 = vpack.c.bf16 %v1170, %v1170
    %v1175 = vpack.c.bf16 %v1171, %v1171
    %v1178 = vunpack.c.l.b16 %v1174
    %v1179 = vunpack.c.l.b16 %v1175
    %v1180 = vpack.c.b16 %v1178, %v1178
    %v1181 = vpack.c.b16 %v1179, %v1179
    %v1182 = vrot.slane %v1180, 5
    %v1183 = vrot.slane %v1181, 5
    %1184 = vrot.lane.b32.xlu0 %v1182, 32
    %v1185 = vpop.permute.xlu0 %1184
    %1186 = vrot.lane.b32.xlu0 %v1183, 32
    %v1187 = vpop.permute.xlu0 %1186
    %vm1190 = vcmask 257027
    %vm1191 = vsmask.f32 3328
    %vm1192 = vmand %vm1190, %vm1191
    %v1193 = vld [vmem:[#allocation10] sm:$0x8]
    %v1194 = vsel %vm1192, %v1185, %v1193
    %1195 = vst [vmem:[#allocation10] sm:$0x8] %v1194
    %v1196 = vld [vmem:[#allocation10 + $0x4] sm:$0x8]
    %v1197 = vsel %vm1192, %v1187, %v1196
    %1198 = vst [vmem:[#allocation10 + $0x4] sm:$0x8] %v1197
    %v1199 = vld [vmem:[#allocation3] sm:$0x3]
    %v1200 = vld [vmem:[#allocation4] sm:$0x3]
    %v1201 = vpack.c.bf16 %v1199, %v1199
    %v1202 = vld [vmem:[#allocation2] sm:$0xf]
    %v1203 = vld [vmem:[#allocation2 + $0x4] sm:$0xf]
    %v1204 = vld [vmem:[#allocation2 + $0x8] sm:$0xf]
    %v1205 = vld [vmem:[#allocation2 + $0xc] sm:$0xf]
    %v1210 = vunpack.c.l.b16 %v1202
    %v1211 = vunpack.c.l.b16 %v1203
    %v1212 = vunpack.c.l.b16 %v1204
    %v1213 = vunpack.c.l.b16 %v1205
    %v1214 = vpack.c.b16 %v1211, %v1210
    %v1215 = vpack.c.b16 %v1213, %v1212
    %v1219 = vsel %vm86, %v1201, 0
    %1221 = vmatprep.subr.bf16.mxu0 0
    %1222 = vmatpush1.bf16.msra.mxu0 0
    %1223 = vmatprep.subr.bf16.mxu0 0
    %1224 = vmatpush1.bf16.msra.mxu0 0
    %1225 = vmatprep.subr.bf16.mxu0 0
    %1226 = vmatpush1.bf16.msra.mxu0 0
    %1227 = vmatprep.subr.bf16.mxu0 0
    %1228 = vmatpush1.bf16.msra.mxu0 0
    %1229 = vmatprep.subr.bf16.mxu0 0
    %1230 = vmatpush1.bf16.msra.mxu0 0
    %1231 = vmatprep.subr.bf16.mxu0 0
    %1232 = vmatpush1.bf16.msra.mxu0 0
    %1233 = vmatprep.subr.bf16.mxu0 0
    %1234 = vmatpush1.bf16.msra.mxu0 %v1215
    %1235 = vmatprep.subr.bf16.mxu0 0
    %1236 = vmatpush1.bf16.msra.mxu0 %v1214
    %1237 = vmatprep.subr.bf16.mxu0 0
    %1238 = vmatpush2.bf16.msra.mxu0 0
    %1239 = vmatprep.subr.bf16.mxu0 0
    %1240 = vmatpush2.bf16.msra.mxu0 0
    %1241 = vmatprep.subr.bf16.mxu0 0
    %1242 = vmatpush2.bf16.msra.mxu0 0
    %1243 = vmatprep.subr.bf16.mxu0 0
    %1244 = vmatpush2.bf16.msra.mxu0 0
    %1245 = vmatprep.subr.bf16.mxu0 0
    %1246 = vmatpush2.bf16.msra.mxu0 0
    %1247 = vmatprep.subr.bf16.mxu0 0
    %1248 = vmatpush2.bf16.msra.mxu0 0
    %1249 = vmatprep.subr.bf16.mxu0 0
    %1250 = vmatpush2.bf16.msra.mxu0 0
    %1251 = vmatprep.subr.bf16.mxu0 0
    %1252 = vmatpush2.bf16.msra.mxu0 0
    %1253 = vmatprep.mubr.bf16.mxu0 0
    %1254 = vmatmul.mubr.bf16.gmra.mxu0 %v1219
    %v1255 = vpop.f32.mrf.mxu0
    %v1256 = vadd.f32 0.0, %v1255
    %v1257 = vpop.f32.mrf.mxu0
    %v1258 = vpop.f32.mrf.mxu0
    %v1259 = vpop.f32.mrf.mxu0
    %1260 = vdwg.mxu0
    %s1261 = scalar_lea.vmem [#allocation5], 7
    %v1262 = vld [vmem:[%s1261] sm:$0x1]
    %v1263 = vunpack.c.l.bf16 %v1262
    %v1264 = vadd.f32 %v1263, %v1256
    %v1265 = vxor.u32 %v1264, 2147483648
    %v1266 = vmul.f32 %v1265, 1.442695
    %v1267 = vpow.pop %v1266
    %v1268 = vadd.f32 %v1267, 1.0
    %v1269 = vrcp.pop %v1268
    %v1270 = vmul.f32 1.0, %v1269
    %v1271 = vtanh.pop %v1264
    %v1274 = vunpack.c.l.s4 1983009808
    %v1275 = vunpack.c.0.s8 %v1274
    %v1276 = vlaneseq
    %v1277 = vshrl.u32 %v1276, 7
    %v1278 = vsub.s32 %v1275, %v1277
    %v1279 = vrot.slane %v1200, %v1278
    %1280 = vrot.lane.b32.xlu0 %v1279, 32
    %v1281 = vpop.permute.xlu0 %1280
    %v1283 = vmul.f32 %v1270, %v1281
    %1285 = vrot.lane.b32.xlu0 %v1271, 64
    %v1286 = vpop.permute.xlu0 %1285
    %v1288 = vmul.f32 %v1270, %v1286
    %1290 = vrot.lane.b32.xlu0 %v1288, 32
    %v1291 = vpop.permute.xlu0 %1290
    %v1293 = vadd.f32 %v1283, %v1291
    %v1294 = vtanh.pop %v1293
    %1296 = vrot.lane.b32.xlu0 %v1294, 64
    %v1297 = vpop.permute.xlu0 %1296
    %v1299 = vmul.f32 %v1270, %v1297
    %v1302 = vunpack.c.l.s4 1983009808
    %v1303 = vunpack.c.0.s8 %v1302
    %v1304 = vlaneseq
    %v1305 = vshrl.u32 %v1304, 7
    %v1306 = vsub.s32 %v1303, %v1305
    %v1307 = vrot.slane %v1293, %v1306
    %1308 = vrot.lane.b32.xlu0 %v1307, 96
    %v1309 = vpop.permute.xlu0 %1308
    %1311 = vst.msk [vmem:[#allocation4] sm:$0x3] %vm179, %v1309
    %v1314 = vunpack.c.l.s4 1983009808
    %v1315 = vunpack.c.0.s8 %v1314
    %v1316 = vlaneseq
    %v1317 = vshrl.u32 %v1316, 7
    %v1318 = vsub.s32 %v1315, %v1317
    %v1319 = vrot.slane %v1299, %v1318
    %1320 = vrot.lane.b32.xlu0 %v1319, 32
    %v1321 = vpop.permute.xlu0 %1320
    %1323 = vst.msk [vmem:[#allocation3] sm:$0x3] %vm179, %v1321
    %v1325 = vunpack.c.l.s4 1966171168
    %v1326 = vunpack.c.0.s8 %v1325
    %v1327 = vlaneseq
    %v1328 = vshrl.u32 %v1327, 7
    %v1329 = vsub.s32 %v1326, %v1328
    %v1330 = vrot.slane %v1299, %v1329
    %v1331 = vcombine.high %v1330, %v1330
    %v1334 = vpack.c.bf16 %v1330, %v1330
    %v1335 = vpack.c.bf16 %v1331, %v1331
    %v1338 = vunpack.c.l.b16 %v1334
    %v1339 = vunpack.c.l.b16 %v1335
    %v1340 = vpack.c.b16 %v1338, %v1338
    %v1341 = vpack.c.b16 %v1339, %v1339
    %v1343 = vshll.u32 %v1340, 16
    %v1345 = vrot.slane %v1343, 5
    %v1347 = vshll.u32 %v1341, 16
    %v1349 = vrot.slane %v1347, 5
    %1350 = vrot.lane.b32.xlu0 %v1345, 32
    %v1351 = vpop.permute.xlu0 %1350
    %1352 = vrot.lane.b32.xlu0 %v1349, 32
    %v1353 = vpop.permute.xlu0 %1352
    %vm1356 = vsmask.f32 7950
    %vm1357 = vmand %vm1190, %vm1356
    %v1358 = vld [vmem:[#allocation10] sm:$0x8]
    %v1359 = vsel %vm1357, %v1351, %v1358
    %1360 = vst [vmem:[#allocation10] sm:$0x8] %v1359
    %v1361 = vld [vmem:[#allocation10 + $0x4] sm:$0x8]
    %v1362 = vsel %vm1357, %v1353, %v1361
    %1363 = vst [vmem:[#allocation10 + $0x4] sm:$0x8] %v1362
    // Predicated region
    $region31: #{tpu_custom_call.1} parent=1 // pred_check
      _
    $region32: #{tpu_custom_call.1} parent=1 // pred_check_branch
      %1365 = sbr.rel (0) target = $region34
    $region33: #{tpu_custom_call.1} parent=1 // pred_region
      %s1367 = ssub.s32 128, 128
      %1368 = vsyncadd [#allocation7], %s1367
      %s1369 = sshll.u32 [#allocation10], 4
      %s1370 = int_to_ptr.vmem [resolvable:$true] %s1369
      %1375 = dma.vmem_to_hbm [thread:$0]  %s1370, 128, %s4, [#allocation7], 64, 64, 4
    $region34: #{tpu_custom_call.1} parent=1 // pred_fallthru
      _
    // Predicated region
    $region35: #{tpu_custom_call.1} parent=1 // pred_check
      _
    $region36: #{tpu_custom_call.1} parent=1 // pred_check_branch
      %1377 = sbr.rel (0) target = $region38
    $region37: #{tpu_custom_call.1} parent=1 // pred_region
      %1378 = dma.done [#allocation7], 128
    $region38: #{tpu_custom_call.1} parent=1 // pred_fallthru
      _
    %1379 = vsyncpa [#allocation6], 1
    %1380 = vsyncpa [#allocation9], 1
    %1381 = vsyncpa [#allocation7], 1

</llo_original>
